<compile_context>
chip_gen: v6e
topology: v6e:2x2x1
jax: 0.10.0
libtpu: 0.0.40
codegen_flags: <defaults>
</compile_context>

<pallas_src>
import functools

import numpy as np
import jax
import jax.numpy as jnp
from jax.experimental import pallas as pl
from jax.experimental.pallas import tpu as pltpu


# ---------------------------------------------------------------------------
# helpers
# ---------------------------------------------------------------------------

def _layernorm(v, gamma, beta, eps=1e-5):
    # v: (S, D), gamma/beta: (1, D). Biased variance, matching nn.LayerNorm.
    mu = jnp.mean(v, axis=-1, keepdims=True)
    var = jnp.mean((v - mu) * (v - mu), axis=-1, keepdims=True)
    return (v - mu) * jax.lax.rsqrt(var + eps) * gamma + beta


# ---------------------------------------------------------------------------
# fused whole-model kernel: all encoder layers + final projection, one grid step
# ---------------------------------------------------------------------------

def _model_kernel(x_ref,
                  wqkv_ref, bqkv_ref, wp_ref, bp_ref, g1_ref, be1_ref,
                  w1_ref, b1_ref, w2_ref, b2_ref, g2_ref, be2_ref,
                  wout_ref, bout_ref, mhead_ref, jblk_ref,
                  out_ref,
                  *, num_layers, num_heads, model_dim):
    D = model_dim
    H = num_heads

    x = x_ref[0]                                                      # (S, D)
    mhead = mhead_ref[...]                                            # (H*S, D)
    jblk = jblk_ref[...]                                              # (H*S, H*S)

    # Static unroll over layers (num_layers is small & known at trace time); the
    # activation `x` stays live in VMEM values across the whole stack.
    for l in range(num_layers):
        # ---- multi-head self-attention -------------------------------------
        # One full-width fused QKV projection (1/sqrt(A) pre-folded into Q cols).
        qkv = (jnp.dot(x, wqkv_ref[l], preferred_element_type=jnp.float32)
               + bqkv_ref[l])
        q = qkv[:, :D]                                                # (S, D), pre-scaled
        k = qkv[:, D:2 * D]                                           # (S, D)
        v = qkv[:, 2 * D:]                                            # (S, D)

        # Block-diagonal head expansion: kblk/vblk[h*S + s', d] = k/v[s', d] * (d//A == h).
        # Whole-vreg, sublane-aligned replication feeding lane-dense matmuls; the
        # context below comes out already packed as (S, H*A) = (S, D).
        kblk = jnp.concatenate([k] * H, axis=0) * mhead               # (H*S, D)
        vblk = jnp.concatenate([v] * H, axis=0) * mhead               # (H*S, D)

        # scores[sq, h*S + sk] = sum_a Q_h[sq, a] * K_h[sk, a]: NT-form dot_general
        # contracting the feature axis — no explicit K^T materialization.
        s = jax.lax.dot_general(q, kblk, (((1,), (1,)), ((), ())),
                                preferred_element_type=jnp.float32)   # (S, H*S)

        # Softmax per (query, head) block. The global row max is a valid stabilizer
        # because it is constant across every head's block of key columns.
        s = s - jnp.max(s, axis=-1, keepdims=True)
        p = jnp.exp(s)
        # Per-head denominators broadcast back across each head block via one matmul
        # with a block-diagonal matrix of ones.
        denom = jnp.dot(p, jblk, preferred_element_type=jnp.float32)
        p = p * pl.reciprocal(denom, approx=True)                     # EUP, not VALU divide
        ctx = jnp.dot(p, vblk, preferred_element_type=jnp.float32)    # (S, D), heads packed

        attn = (jnp.dot(ctx, wp_ref[l], preferred_element_type=jnp.float32)
                + bp_ref[l])

        # ---- AddNorm 1 (dropout == identity in eval mode) ------------------
        y = _layernorm(x + attn, g1_ref[l], be1_ref[l])

        # ---- Feedforward: Linear -> ReLU -> Linear (dropout == identity) ---
        h1 = jnp.maximum(
            jnp.dot(y, w1_ref[l], preferred_element_type=jnp.float32) + b1_ref[l],
            0.0)
        ff = jnp.dot(h1, w2_ref[l], preferred_element_type=jnp.float32) + b2_ref[l]

        # ---- AddNorm 2 ------------------------------------------------------
        x = _layernorm(y + ff, g2_ref[l], be2_ref[l])

    # ---- final Linear(model_dim -> target_dim) ------------------------------
    out_ref[0] = (jnp.dot(x, wout_ref[...], preferred_element_type=jnp.float32)
                  + bout_ref[...])


_LAYER_KEYS = ("wqkvT", "bqkv", "wpT", "bp", "g1", "be1",
               "w1T", "b1", "w2T", "b2", "g2", "be2")


def single_model_self_attn(x, stacked, final, masks, num_heads):
    """Runs the whole stack (all layers + final projection) in ONE pallas_call
    with a single grid step per batch element."""
    B, S, D = x.shape
    L = stacked["wqkvT"].shape[0]
    T = final["woutT"].shape[1]

    def const_spec(arr):
        nd = arr.ndim
        # Full-array block, constant block index -> DMA'd into VMEM exactly once.
        return pl.BlockSpec(arr.shape, lambda b, _nd=nd: (0,) * _nd)

    weight_args = ([stacked[kname] for kname in _LAYER_KEYS]
                   + [final["woutT"], final["bout"], masks["mhead"], masks["jblk"]])

    in_specs = ([pl.BlockSpec((1, S, D), lambda b: (b, 0, 0))]
                + [const_spec(a) for a in weight_args])

    kernel = functools.partial(_model_kernel, num_layers=L,
                               num_heads=num_heads, model_dim=D)

    return pl.pallas_call(
        kernel,
        out_shape=jax.ShapeDtypeStruct((B, S, T), jnp.float32),
        grid=(B,),
        in_specs=in_specs,
        out_specs=pl.BlockSpec((1, S, T), lambda b: (b, 0, 0)),
        compiler_params=pltpu.CompilerParams(
            # batch axis "parallel": one batch element per TensorCore on v7x.
            dimension_semantics=("parallel",)),
    )(x, *weight_args)


# ---------------------------------------------------------------------------
# parameter construction (deterministic, synthetic) + MXU-friendly packing
# ---------------------------------------------------------------------------

def init_params(key, model_dim, target_dim, layer_num, num_heads):
    A = model_dim // num_heads
    D = model_dim
    layers = []
    for _ in range(layer_num):
        keys = jax.random.split(key, 13)
        key = keys[-1]
        p = {
            # PyTorch Linear weight is (out, in); store transposed (in, out) for x @ W^T.
            "wqT": jax.random.normal(keys[0], (num_heads, D, A), jnp.float32) * 0.05,
            "bq":  jax.random.normal(keys[1], (num_heads, 1, A), jnp.float32) * 0.05,
            "wkT": jax.random.normal(keys[2], (num_heads, D, A), jnp.float32) * 0.05,
            "bk":  jax.random.normal(keys[3], (num_heads, 1, A), jnp.float32) * 0.05,
            "wvT": jax.random.normal(keys[4], (num_heads, D, A), jnp.float32) * 0.05,
            "bv":  jax.random.normal(keys[5], (num_heads, 1, A), jnp.float32) * 0.05,
            "wpT": jax.random.normal(keys[6], (D, D), jnp.float32) * 0.05,
            "bp":  jax.random.normal(keys[7], (1, D), jnp.float32) * 0.05,
            "g1":  jnp.ones((1, D), jnp.float32),
            "be1": jnp.zeros((1, D), jnp.float32),
            "w1T": jax.random.normal(keys[8], (D, D), jnp.float32) * 0.05,
            "b1":  jax.random.normal(keys[9], (1, D), jnp.float32) * 0.05,
            "w2T": jax.random.normal(keys[10], (D, D), jnp.float32) * 0.05,
            "b2":  jax.random.normal(keys[11], (1, D), jnp.float32) * 0.05,
            "g2":  jnp.ones((1, D), jnp.float32),
            "be2": jnp.zeros((1, D), jnp.float32),
        }
        layers.append(p)
    k1, k2 = jax.random.split(key)
    final = {
        "woutT": jax.random.normal(k1, (D, target_dim), jnp.float32) * 0.05,
        "bout":  jax.random.normal(k2, (1, target_dim), jnp.float32) * 0.05,
    }
    return layers, final


def stack_params(layer_params, attn_dim):
    """Pack per-head weights into full-width per-layer tensors and stack them on a
    leading layer axis (so every layer runs inside one pallas_call). The 1/sqrt(A)
    attention scale is folded into the Q weights/bias (exact rewrite)."""
    scale = 1.0 / (attn_dim ** 0.5)

    def heads_to_cols(w):            # (H, R, A) -> (R, H*A), head-major column order
        H, R, A = w.shape
        return jnp.transpose(w, (1, 0, 2)).reshape(R, H * A)

    per_layer = []
    for p in layer_params:
        wq = heads_to_cols(p["wqT"]) * scale
        bq = heads_to_cols(p["bq"]) * scale
        wk = heads_to_cols(p["wkT"])
        bk = heads_to_cols(p["bk"])
        wv = heads_to_cols(p["wvT"])
        bv = heads_to_cols(p["bv"])
        per_layer.append({
            "wqkvT": jnp.concatenate([wq, wk, wv], axis=1),   # (D, 3D)
            "bqkv":  jnp.concatenate([bq, bk, bv], axis=1),   # (1, 3D)
            "wpT": p["wpT"], "bp": p["bp"],
            "g1": p["g1"], "be1": p["be1"],
            "w1T": p["w1T"], "b1": p["b1"],
            "w2T": p["w2T"], "b2": p["b2"],
            "g2": p["g2"], "be2": p["be2"],
        })
    return {kname: jnp.stack([lyr[kname] for lyr in per_layer], axis=0)
            for kname in _LAYER_KEYS}


def build_masks(num_heads, attn_dim, seq_len):
    """Constant block-diagonal masks used by the fused multi-head attention."""
    H, A, S = num_heads, attn_dim, seq_len
    D = H * A
    row_head = np.repeat(np.arange(H), S)            # head owning row h*S + s'
    col_head = np.repeat(np.arange(H), A)            # head owning feature column d
    mhead = (row_head[:, None] == col_head[None, :]).astype(np.float32)   # (H*S, D)
    jblk = (row_head[:, None] == row_head[None, :]).astype(np.float32)    # (H*S, H*S)
    return {"mhead": jnp.asarray(mhead), "jblk": jnp.asarray(jblk)}


# ---------------------------------------------------------------------------
# pure-JAX reference (mirrors the PyTorch module op-for-op) for sanity check
# ---------------------------------------------------------------------------

def _ref_forward(x, layer_params, final_params, num_heads, attn_dim):
    def ln(v, g, b, eps=1e-5):
        mu = v.mean(-1, keepdims=True)
        var = ((v - mu) ** 2).mean(-1, keepdims=True)
        return (v - mu) / jnp.sqrt(var + eps) * g + b

    for p in layer_params:
        heads = []
        for h in range(num_heads):
            q = x @ p["wqT"][h] + p["bq"][h]
            k = x @ p["wkT"][h] + p["bk"][h]
            v = x @ p["wvT"][h] + p["bv"][h]
            s = jnp.einsum("bqa,bka->bqk", q, k) / (attn_dim ** 0.5)
            heads.append(jnp.einsum("bqk,bka->bqa", jax.nn.softmax(s, -1), v))
        attn = jnp.concatenate(heads, -1) @ p["wpT"] + p["bp"]
        y = ln(x + attn, p["g1"], p["be1"])
        ff = jnp.maximum(y @ p["w1T"] + p["b1"], 0.0) @ p["w2T"] + p["b2"]
        x = ln(y + ff, p["g2"], p["be2"])
    return x @ final_params["woutT"] + final_params["bout"]


# ---------------------------------------------------------------------------

if __name__ == "__main__":
    # Small shapes consistent with the module: model_dim=32, num_heads=8 -> attn_dim=4
    B, S = 2, 8
    MODEL_DIM, TARGET_DIM, LAYER_NUM, NUM_HEADS = 32, 16, 2, 8
    ATTN_DIM = MODEL_DIM // NUM_HEADS

    key = jax.random.PRNGKey(0)
    kx, kp = jax.random.split(key)
    x = jax.random.normal(kx, (B, S, MODEL_DIM), jnp.float32)

    layer_params, final_params = init_params(kp, MODEL_DIM, TARGET_DIM,
                                             LAYER_NUM, NUM_HEADS)
    stacked = stack_params(layer_params, ATTN_DIM)
    masks = build_masks(NUM_HEADS, ATTN_DIM, S)

    out = single_model_self_attn(x, stacked, final_params, masks, NUM_HEADS)
    out = jax.block_until_ready(out)
    assert out.shape == (B, S, TARGET_DIM), out.shape

    ref = _ref_forward(x, layer_params, final_params, NUM_HEADS, ATTN_DIM)
    # Only intended divergence from the exact reference is the EUP approximate
    # reciprocal in the softmax denominator (and summation order).
    assert jnp.allclose(out, ref, atol=2e-3, rtol=2e-3), "mismatch vs JAX reference"

    print("KERNEL_OK")
</pallas_src>

<mosaic_0001>
module attributes {stable_mosaic.version = 11 : i64} {
  func.func @_model_kernel(%arg0: i32, %arg1: memref<1x8x32xf32, #tpu.memory_space<vmem>>, %arg2: memref<2x32x96xf32, #tpu.memory_space<vmem>>, %arg3: memref<2x1x96xf32, #tpu.memory_space<vmem>>, %arg4: memref<2x32x32xf32, #tpu.memory_space<vmem>>, %arg5: memref<2x1x32xf32, #tpu.memory_space<vmem>>, %arg6: memref<2x1x32xf32, #tpu.memory_space<vmem>>, %arg7: memref<2x1x32xf32, #tpu.memory_space<vmem>>, %arg8: memref<2x32x32xf32, #tpu.memory_space<vmem>>, %arg9: memref<2x1x32xf32, #tpu.memory_space<vmem>>, %arg10: memref<2x32x32xf32, #tpu.memory_space<vmem>>, %arg11: memref<2x1x32xf32, #tpu.memory_space<vmem>>, %arg12: memref<2x1x32xf32, #tpu.memory_space<vmem>>, %arg13: memref<2x1x32xf32, #tpu.memory_space<vmem>>, %arg14: memref<32x16xf32, #tpu.memory_space<vmem>>, %arg15: memref<1x16xf32, #tpu.memory_space<vmem>>, %arg16: memref<64x32xf32, #tpu.memory_space<vmem>>, %arg17: memref<64x64xf32, #tpu.memory_space<vmem>>, %arg18: memref<1x8x16xf32, #tpu.memory_space<vmem>>) attributes {dimension_semantics = [#tpu.dimension_semantics<parallel>], iteration_bounds = array<i64: 2>, scalar_prefetch = 0 : i64, scratch_operands = 0 : i64, tpu.core_type = #tpu.core_type<tc>, window_params = [{transform_indices = @transform_0, window_bounds = array<i64: 1, 8, 32>}, {pipeline_mode = #tpu.pipeline_mode<synchronous>, transform_indices = @transform_1, window_bounds = array<i64: 2, 32, 96>}, {pipeline_mode = #tpu.pipeline_mode<synchronous>, transform_indices = @transform_2, window_bounds = array<i64: 2, 1, 96>}, {pipeline_mode = #tpu.pipeline_mode<synchronous>, transform_indices = @transform_3, window_bounds = array<i64: 2, 32, 32>}, {pipeline_mode = #tpu.pipeline_mode<synchronous>, transform_indices = @transform_4, window_bounds = array<i64: 2, 1, 32>}, {pipeline_mode = #tpu.pipeline_mode<synchronous>, transform_indices = @transform_5, window_bounds = array<i64: 2, 1, 32>}, {pipeline_mode = #tpu.pipeline_mode<synchronous>, transform_indices = @transform_6, window_bounds = array<i64: 2, 1, 32>}, {pipeline_mode = #tpu.pipeline_mode<synchronous>, transform_indices = @transform_7, window_bounds = array<i64: 2, 32, 32>}, {pipeline_mode = #tpu.pipeline_mode<synchronous>, transform_indices = @transform_8, window_bounds = array<i64: 2, 1, 32>}, {pipeline_mode = #tpu.pipeline_mode<synchronous>, transform_indices = @transform_9, window_bounds = array<i64: 2, 32, 32>}, {pipeline_mode = #tpu.pipeline_mode<synchronous>, transform_indices = @transform_10, window_bounds = array<i64: 2, 1, 32>}, {pipeline_mode = #tpu.pipeline_mode<synchronous>, transform_indices = @transform_11, window_bounds = array<i64: 2, 1, 32>}, {pipeline_mode = #tpu.pipeline_mode<synchronous>, transform_indices = @transform_12, window_bounds = array<i64: 2, 1, 32>}, {pipeline_mode = #tpu.pipeline_mode<synchronous>, transform_indices = @transform_13, window_bounds = array<i64: 32, 16>}, {pipeline_mode = #tpu.pipeline_mode<synchronous>, transform_indices = @transform_14, window_bounds = array<i64: 1, 16>}, {pipeline_mode = #tpu.pipeline_mode<synchronous>, transform_indices = @transform_15, window_bounds = array<i64: 64, 32>}, {pipeline_mode = #tpu.pipeline_mode<synchronous>, transform_indices = @transform_16, window_bounds = array<i64: 64, 64>}, {transform_indices = @transform_17, window_bounds = array<i64: 1, 8, 16>}]} {
    %c0 = arith.constant 0 : index
    %c0_0 = arith.constant 0 : index
    %c0_1 = arith.constant 0 : index
    %0 = vector.load %arg1[%c0, %c0_0, %c0_1] : memref<1x8x32xf32, #tpu.memory_space<vmem>>, vector<1x8x32xf32>
    %1 = vector.shape_cast %0 : vector<1x8x32xf32> to vector<8x32xf32>
    %c0_2 = arith.constant 0 : index
    %c0_3 = arith.constant 0 : index
    %2 = vector.load %arg16[%c0_2, %c0_3] : memref<64x32xf32, #tpu.memory_space<vmem>>, vector<64x32xf32>
    %c0_4 = arith.constant 0 : index
    %c0_5 = arith.constant 0 : index
    %3 = vector.load %arg17[%c0_4, %c0_5] : memref<64x64xf32, #tpu.memory_space<vmem>>, vector<64x64xf32>
    %c0_6 = arith.constant 0 : index
    %c0_7 = arith.constant 0 : index
    %c0_8 = arith.constant 0 : index
    %4 = vector.load %arg2[%c0_6, %c0_7, %c0_8] : memref<2x32x96xf32, #tpu.memory_space<vmem>>, vector<1x32x96xf32>
    %5 = vector.shape_cast %4 : vector<1x32x96xf32> to vector<32x96xf32>
    %cst = arith.constant dense<0.000000e+00> : vector<8x96xf32>
    %6 = tpu.matmul %1, %5, %cst {dimension_numbers = #tpu.dot_dimension_numbers<[1], [0], [0], [1], [0, 0, 1, 1], [], []>} : vector<8x32xf32>, vector<32x96xf32>, vector<8x96xf32> -> vector<8x96xf32>
    %c0_9 = arith.constant 0 : index
    %c0_10 = arith.constant 0 : index
    %c0_11 = arith.constant 0 : index
    %7 = vector.load %arg3[%c0_9, %c0_10, %c0_11] : memref<2x1x96xf32, #tpu.memory_space<vmem>>, vector<1x1x96xf32>
    %8 = vector.shape_cast %7 : vector<1x1x96xf32> to vector<1x96xf32>
    %9 = vector.broadcast %8 : vector<1x96xf32> to vector<8x96xf32>
    %10 = arith.addf %6, %9 : vector<8x96xf32>
    %11 = vector.extract_strided_slice %10 {offsets = [0, 0], sizes = [8, 32], strides = [1, 1]} : vector<8x96xf32> to vector<8x32xf32>
    %12 = vector.extract_strided_slice %10 {offsets = [0, 32], sizes = [8, 32], strides = [1, 1]} : vector<8x96xf32> to vector<8x32xf32>
    %13 = vector.extract_strided_slice %10 {offsets = [0, 64], sizes = [8, 32], strides = [1, 1]} : vector<8x96xf32> to vector<8x32xf32>
    %14 = tpu.concatenate %12, %12, %12, %12, %12, %12, %12, %12 in 0 : vector<8x32xf32>, vector<8x32xf32>, vector<8x32xf32>, vector<8x32xf32>, vector<8x32xf32>, vector<8x32xf32>, vector<8x32xf32>, vector<8x32xf32> -> vector<64x32xf32>
    %15 = arith.mulf %14, %2 : vector<64x32xf32>
    %16 = tpu.concatenate %13, %13, %13, %13, %13, %13, %13, %13 in 0 : vector<8x32xf32>, vector<8x32xf32>, vector<8x32xf32>, vector<8x32xf32>, vector<8x32xf32>, vector<8x32xf32>, vector<8x32xf32>, vector<8x32xf32> -> vector<64x32xf32>
    %17 = arith.mulf %16, %2 : vector<64x32xf32>
    %cst_12 = arith.constant dense<0.000000e+00> : vector<8x64xf32>
    %18 = tpu.matmul %11, %15, %cst_12 {dimension_numbers = #tpu.dot_dimension_numbers<[1], [1], [0], [0], [0, 0, 1, 0], [], []>} : vector<8x32xf32>, vector<64x32xf32>, vector<8x64xf32> -> vector<8x64xf32>
    %cst_13 = arith.constant dense<0xFF800000> : vector<8xf32>
    %19 = vector.multi_reduction <maximumf>, %18, %cst_13 [1] : vector<8x64xf32> to vector<8xf32>
    %20 = vector.shape_cast %19 : vector<8xf32> to vector<8x1xf32>
    %21 = vector.broadcast %20 : vector<8x1xf32> to vector<8x64xf32>
    %22 = arith.subf %18, %21 : vector<8x64xf32>
    %23 = math.exp %22 : vector<8x64xf32>
    %cst_14 = arith.constant dense<0.000000e+00> : vector<8x64xf32>
    %24 = tpu.matmul %23, %3, %cst_14 {dimension_numbers = #tpu.dot_dimension_numbers<[1], [0], [0], [1], [0, 0, 1, 1], [], []>} : vector<8x64xf32>, vector<64x64xf32>, vector<8x64xf32> -> vector<8x64xf32>
    %25 = tpu.reciprocal %24 {approx = true} : vector<8x64xf32> -> vector<8x64xf32>
    %26 = arith.mulf %23, %25 : vector<8x64xf32>
    %cst_15 = arith.constant dense<0.000000e+00> : vector<8x32xf32>
    %27 = tpu.matmul %26, %17, %cst_15 {dimension_numbers = #tpu.dot_dimension_numbers<[1], [0], [0], [1], [0, 0, 1, 1], [], []>} : vector<8x64xf32>, vector<64x32xf32>, vector<8x32xf32> -> vector<8x32xf32>
    %c0_16 = arith.constant 0 : index
    %c0_17 = arith.constant 0 : index
    %c0_18 = arith.constant 0 : index
    %28 = vector.load %arg4[%c0_16, %c0_17, %c0_18] : memref<2x32x32xf32, #tpu.memory_space<vmem>>, vector<1x32x32xf32>
    %29 = vector.shape_cast %28 : vector<1x32x32xf32> to vector<32x32xf32>
    %cst_19 = arith.constant dense<0.000000e+00> : vector<8x32xf32>
    %30 = tpu.matmul %27, %29, %cst_19 {dimension_numbers = #tpu.dot_dimension_numbers<[1], [0], [0], [1], [0, 0, 1, 1], [], []>} : vector<8x32xf32>, vector<32x32xf32>, vector<8x32xf32> -> vector<8x32xf32>
    %c0_20 = arith.constant 0 : index
    %c0_21 = arith.constant 0 : index
    %c0_22 = arith.constant 0 : index
    %31 = vector.load %arg5[%c0_20, %c0_21, %c0_22] : memref<2x1x32xf32, #tpu.memory_space<vmem>>, vector<1x1x32xf32>
    %32 = vector.shape_cast %31 : vector<1x1x32xf32> to vector<1x32xf32>
    %33 = vector.broadcast %32 : vector<1x32xf32> to vector<8x32xf32>
    %34 = arith.addf %30, %33 : vector<8x32xf32>
    %35 = arith.addf %1, %34 : vector<8x32xf32>
    %c0_23 = arith.constant 0 : index
    %c0_24 = arith.constant 0 : index
    %c0_25 = arith.constant 0 : index
    %36 = vector.load %arg6[%c0_23, %c0_24, %c0_25] : memref<2x1x32xf32, #tpu.memory_space<vmem>>, vector<1x1x32xf32>
    %37 = vector.shape_cast %36 : vector<1x1x32xf32> to vector<1x32xf32>
    %c0_26 = arith.constant 0 : index
    %c0_27 = arith.constant 0 : index
    %c0_28 = arith.constant 0 : index
    %38 = vector.load %arg7[%c0_26, %c0_27, %c0_28] : memref<2x1x32xf32, #tpu.memory_space<vmem>>, vector<1x1x32xf32>
    %39 = vector.shape_cast %38 : vector<1x1x32xf32> to vector<1x32xf32>
    %cst_29 = arith.constant dense<0.000000e+00> : vector<8xf32>
    %40 = vector.multi_reduction <add>, %35, %cst_29 [1] : vector<8x32xf32> to vector<8xf32>
    %41 = vector.shape_cast %40 : vector<8xf32> to vector<8x1xf32>
    %cst_30 = arith.constant 3.200000e+01 : f32
    %42 = vector.broadcast %cst_30 : f32 to vector<8x1xf32>
    %43 = arith.divf %41, %42 : vector<8x1xf32>
    %44 = vector.broadcast %43 : vector<8x1xf32> to vector<8x32xf32>
    %45 = arith.subf %35, %44 : vector<8x32xf32>
    %46 = vector.broadcast %43 : vector<8x1xf32> to vector<8x32xf32>
    %47 = arith.subf %35, %46 : vector<8x32xf32>
    %48 = arith.mulf %45, %47 : vector<8x32xf32>
    %cst_31 = arith.constant dense<0.000000e+00> : vector<8xf32>
    %49 = vector.multi_reduction <add>, %48, %cst_31 [1] : vector<8x32xf32> to vector<8xf32>
    %50 = vector.shape_cast %49 : vector<8xf32> to vector<8x1xf32>
    %cst_32 = arith.constant 3.200000e+01 : f32
    %51 = vector.broadcast %cst_32 : f32 to vector<8x1xf32>
    %52 = arith.divf %50, %51 : vector<8x1xf32>
    %53 = vector.broadcast %43 : vector<8x1xf32> to vector<8x32xf32>
    %54 = arith.subf %35, %53 : vector<8x32xf32>
    %cst_33 = arith.constant 9.99999974E-6 : f32
    %55 = vector.broadcast %cst_33 : f32 to vector<8x1xf32>
    %56 = arith.addf %52, %55 : vector<8x1xf32>
    %57 = math.rsqrt %56 : vector<8x1xf32>
    %58 = vector.broadcast %57 : vector<8x1xf32> to vector<8x32xf32>
    %59 = arith.mulf %54, %58 : vector<8x32xf32>
    %60 = vector.broadcast %37 : vector<1x32xf32> to vector<8x32xf32>
    %61 = arith.mulf %59, %60 : vector<8x32xf32>
    %62 = vector.broadcast %39 : vector<1x32xf32> to vector<8x32xf32>
    %63 = arith.addf %61, %62 : vector<8x32xf32>
    %c0_34 = arith.constant 0 : index
    %c0_35 = arith.constant 0 : index
    %c0_36 = arith.constant 0 : index
    %64 = vector.load %arg8[%c0_34, %c0_35, %c0_36] : memref<2x32x32xf32, #tpu.memory_space<vmem>>, vector<1x32x32xf32>
    %65 = vector.shape_cast %64 : vector<1x32x32xf32> to vector<32x32xf32>
    %cst_37 = arith.constant dense<0.000000e+00> : vector<8x32xf32>
    %66 = tpu.matmul %63, %65, %cst_37 {dimension_numbers = #tpu.dot_dimension_numbers<[1], [0], [0], [1], [0, 0, 1, 1], [], []>} : vector<8x32xf32>, vector<32x32xf32>, vector<8x32xf32> -> vector<8x32xf32>
    %c0_38 = arith.constant 0 : index
    %c0_39 = arith.constant 0 : index
    %c0_40 = arith.constant 0 : index
    %67 = vector.load %arg9[%c0_38, %c0_39, %c0_40] : memref<2x1x32xf32, #tpu.memory_space<vmem>>, vector<1x1x32xf32>
    %68 = vector.shape_cast %67 : vector<1x1x32xf32> to vector<1x32xf32>
    %69 = vector.broadcast %68 : vector<1x32xf32> to vector<8x32xf32>
    %70 = arith.addf %66, %69 : vector<8x32xf32>
    %cst_41 = arith.constant 0.000000e+00 : f32
    %71 = vector.broadcast %cst_41 : f32 to vector<8x32xf32>
    %72 = arith.maximumf %70, %71 : vector<8x32xf32>
    %c0_42 = arith.constant 0 : index
    %c0_43 = arith.constant 0 : index
    %c0_44 = arith.constant 0 : index
    %73 = vector.load %arg10[%c0_42, %c0_43, %c0_44] : memref<2x32x32xf32, #tpu.memory_space<vmem>>, vector<1x32x32xf32>
    %74 = vector.shape_cast %73 : vector<1x32x32xf32> to vector<32x32xf32>
    %cst_45 = arith.constant dense<0.000000e+00> : vector<8x32xf32>
    %75 = tpu.matmul %72, %74, %cst_45 {dimension_numbers = #tpu.dot_dimension_numbers<[1], [0], [0], [1], [0, 0, 1, 1], [], []>} : vector<8x32xf32>, vector<32x32xf32>, vector<8x32xf32> -> vector<8x32xf32>
    %c0_46 = arith.constant 0 : index
    %c0_47 = arith.constant 0 : index
    %c0_48 = arith.constant 0 : index
    %76 = vector.load %arg11[%c0_46, %c0_47, %c0_48] : memref<2x1x32xf32, #tpu.memory_space<vmem>>, vector<1x1x32xf32>
    %77 = vector.shape_cast %76 : vector<1x1x32xf32> to vector<1x32xf32>
    %78 = vector.broadcast %77 : vector<1x32xf32> to vector<8x32xf32>
    %79 = arith.addf %75, %78 : vector<8x32xf32>
    %80 = arith.addf %63, %79 : vector<8x32xf32>
    %c0_49 = arith.constant 0 : index
    %c0_50 = arith.constant 0 : index
    %c0_51 = arith.constant 0 : index
    %81 = vector.load %arg12[%c0_49, %c0_50, %c0_51] : memref<2x1x32xf32, #tpu.memory_space<vmem>>, vector<1x1x32xf32>
    %82 = vector.shape_cast %81 : vector<1x1x32xf32> to vector<1x32xf32>
    %c0_52 = arith.constant 0 : index
    %c0_53 = arith.constant 0 : index
    %c0_54 = arith.constant 0 : index
    %83 = vector.load %arg13[%c0_52, %c0_53, %c0_54] : memref<2x1x32xf32, #tpu.memory_space<vmem>>, vector<1x1x32xf32>
    %84 = vector.shape_cast %83 : vector<1x1x32xf32> to vector<1x32xf32>
    %cst_55 = arith.constant dense<0.000000e+00> : vector<8xf32>
    %85 = vector.multi_reduction <add>, %80, %cst_55 [1] : vector<8x32xf32> to vector<8xf32>
    %86 = vector.shape_cast %85 : vector<8xf32> to vector<8x1xf32>
    %cst_56 = arith.constant 3.200000e+01 : f32
    %87 = vector.broadcast %cst_56 : f32 to vector<8x1xf32>
    %88 = arith.divf %86, %87 : vector<8x1xf32>
    %89 = vector.broadcast %88 : vector<8x1xf32> to vector<8x32xf32>
    %90 = arith.subf %80, %89 : vector<8x32xf32>
    %91 = vector.broadcast %88 : vector<8x1xf32> to vector<8x32xf32>
    %92 = arith.subf %80, %91 : vector<8x32xf32>
    %93 = arith.mulf %90, %92 : vector<8x32xf32>
    %cst_57 = arith.constant dense<0.000000e+00> : vector<8xf32>
    %94 = vector.multi_reduction <add>, %93, %cst_57 [1] : vector<8x32xf32> to vector<8xf32>
    %95 = vector.shape_cast %94 : vector<8xf32> to vector<8x1xf32>
    %cst_58 = arith.constant 3.200000e+01 : f32
    %96 = vector.broadcast %cst_58 : f32 to vector<8x1xf32>
    %97 = arith.divf %95, %96 : vector<8x1xf32>
    %98 = vector.broadcast %88 : vector<8x1xf32> to vector<8x32xf32>
    %99 = arith.subf %80, %98 : vector<8x32xf32>
    %cst_59 = arith.constant 9.99999974E-6 : f32
    %100 = vector.broadcast %cst_59 : f32 to vector<8x1xf32>
    %101 = arith.addf %97, %100 : vector<8x1xf32>
    %102 = math.rsqrt %101 : vector<8x1xf32>
    %103 = vector.broadcast %102 : vector<8x1xf32> to vector<8x32xf32>
    %104 = arith.mulf %99, %103 : vector<8x32xf32>
    %105 = vector.broadcast %82 : vector<1x32xf32> to vector<8x32xf32>
    %106 = arith.mulf %104, %105 : vector<8x32xf32>
    %107 = vector.broadcast %84 : vector<1x32xf32> to vector<8x32xf32>
    %108 = arith.addf %106, %107 : vector<8x32xf32>
    %c1 = arith.constant 1 : index
    %c0_60 = arith.constant 0 : index
    %c0_61 = arith.constant 0 : index
    %109 = vector.load %arg2[%c1, %c0_60, %c0_61] : memref<2x32x96xf32, #tpu.memory_space<vmem>>, vector<1x32x96xf32>
    %110 = vector.shape_cast %109 : vector<1x32x96xf32> to vector<32x96xf32>
    %cst_62 = arith.constant dense<0.000000e+00> : vector<8x96xf32>
    %111 = tpu.matmul %108, %110, %cst_62 {dimension_numbers = #tpu.dot_dimension_numbers<[1], [0], [0], [1], [0, 0, 1, 1], [], []>} : vector<8x32xf32>, vector<32x96xf32>, vector<8x96xf32> -> vector<8x96xf32>
    %c1_63 = arith.constant 1 : index
    %c0_64 = arith.constant 0 : index
    %c0_65 = arith.constant 0 : index
    %112 = vector.load %arg3[%c1_63, %c0_64, %c0_65] : memref<2x1x96xf32, #tpu.memory_space<vmem>>, vector<1x1x96xf32>
    %113 = vector.shape_cast %112 : vector<1x1x96xf32> to vector<1x96xf32>
    %114 = vector.broadcast %113 : vector<1x96xf32> to vector<8x96xf32>
    %115 = arith.addf %111, %114 : vector<8x96xf32>
    %116 = vector.extract_strided_slice %115 {offsets = [0, 0], sizes = [8, 32], strides = [1, 1]} : vector<8x96xf32> to vector<8x32xf32>
    %117 = vector.extract_strided_slice %115 {offsets = [0, 32], sizes = [8, 32], strides = [1, 1]} : vector<8x96xf32> to vector<8x32xf32>
    %118 = vector.extract_strided_slice %115 {offsets = [0, 64], sizes = [8, 32], strides = [1, 1]} : vector<8x96xf32> to vector<8x32xf32>
    %119 = tpu.concatenate %117, %117, %117, %117, %117, %117, %117, %117 in 0 : vector<8x32xf32>, vector<8x32xf32>, vector<8x32xf32>, vector<8x32xf32>, vector<8x32xf32>, vector<8x32xf32>, vector<8x32xf32>, vector<8x32xf32> -> vector<64x32xf32>
    %120 = arith.mulf %119, %2 : vector<64x32xf32>
    %121 = tpu.concatenate %118, %118, %118, %118, %118, %118, %118, %118 in 0 : vector<8x32xf32>, vector<8x32xf32>, vector<8x32xf32>, vector<8x32xf32>, vector<8x32xf32>, vector<8x32xf32>, vector<8x32xf32>, vector<8x32xf32> -> vector<64x32xf32>
    %122 = arith.mulf %121, %2 : vector<64x32xf32>
    %cst_66 = arith.constant dense<0.000000e+00> : vector<8x64xf32>
    %123 = tpu.matmul %116, %120, %cst_66 {dimension_numbers = #tpu.dot_dimension_numbers<[1], [1], [0], [0], [0, 0, 1, 0], [], []>} : vector<8x32xf32>, vector<64x32xf32>, vector<8x64xf32> -> vector<8x64xf32>
    %cst_67 = arith.constant dense<0xFF800000> : vector<8xf32>
    %124 = vector.multi_reduction <maximumf>, %123, %cst_67 [1] : vector<8x64xf32> to vector<8xf32>
    %125 = vector.shape_cast %124 : vector<8xf32> to vector<8x1xf32>
    %126 = vector.broadcast %125 : vector<8x1xf32> to vector<8x64xf32>
    %127 = arith.subf %123, %126 : vector<8x64xf32>
    %128 = math.exp %127 : vector<8x64xf32>
    %cst_68 = arith.constant dense<0.000000e+00> : vector<8x64xf32>
    %129 = tpu.matmul %128, %3, %cst_68 {dimension_numbers = #tpu.dot_dimension_numbers<[1], [0], [0], [1], [0, 0, 1, 1], [], []>} : vector<8x64xf32>, vector<64x64xf32>, vector<8x64xf32> -> vector<8x64xf32>
    %130 = tpu.reciprocal %129 {approx = true} : vector<8x64xf32> -> vector<8x64xf32>
    %131 = arith.mulf %128, %130 : vector<8x64xf32>
    %cst_69 = arith.constant dense<0.000000e+00> : vector<8x32xf32>
    %132 = tpu.matmul %131, %122, %cst_69 {dimension_numbers = #tpu.dot_dimension_numbers<[1], [0], [0], [1], [0, 0, 1, 1], [], []>} : vector<8x64xf32>, vector<64x32xf32>, vector<8x32xf32> -> vector<8x32xf32>
    %c1_70 = arith.constant 1 : index
    %c0_71 = arith.constant 0 : index
    %c0_72 = arith.constant 0 : index
    %133 = vector.load %arg4[%c1_70, %c0_71, %c0_72] : memref<2x32x32xf32, #tpu.memory_space<vmem>>, vector<1x32x32xf32>
    %134 = vector.shape_cast %133 : vector<1x32x32xf32> to vector<32x32xf32>
    %cst_73 = arith.constant dense<0.000000e+00> : vector<8x32xf32>
    %135 = tpu.matmul %132, %134, %cst_73 {dimension_numbers = #tpu.dot_dimension_numbers<[1], [0], [0], [1], [0, 0, 1, 1], [], []>} : vector<8x32xf32>, vector<32x32xf32>, vector<8x32xf32> -> vector<8x32xf32>
    %c1_74 = arith.constant 1 : index
    %c0_75 = arith.constant 0 : index
    %c0_76 = arith.constant 0 : index
    %136 = vector.load %arg5[%c1_74, %c0_75, %c0_76] : memref<2x1x32xf32, #tpu.memory_space<vmem>>, vector<1x1x32xf32>
    %137 = vector.shape_cast %136 : vector<1x1x32xf32> to vector<1x32xf32>
    %138 = vector.broadcast %137 : vector<1x32xf32> to vector<8x32xf32>
    %139 = arith.addf %135, %138 : vector<8x32xf32>
    %140 = arith.addf %108, %139 : vector<8x32xf32>
    %c1_77 = arith.constant 1 : index
    %c0_78 = arith.constant 0 : index
    %c0_79 = arith.constant 0 : index
    %141 = vector.load %arg6[%c1_77, %c0_78, %c0_79] : memref<2x1x32xf32, #tpu.memory_space<vmem>>, vector<1x1x32xf32>
    %142 = vector.shape_cast %141 : vector<1x1x32xf32> to vector<1x32xf32>
    %c1_80 = arith.constant 1 : index
    %c0_81 = arith.constant 0 : index
    %c0_82 = arith.constant 0 : index
    %143 = vector.load %arg7[%c1_80, %c0_81, %c0_82] : memref<2x1x32xf32, #tpu.memory_space<vmem>>, vector<1x1x32xf32>
    %144 = vector.shape_cast %143 : vector<1x1x32xf32> to vector<1x32xf32>
    %cst_83 = arith.constant dense<0.000000e+00> : vector<8xf32>
    %145 = vector.multi_reduction <add>, %140, %cst_83 [1] : vector<8x32xf32> to vector<8xf32>
    %146 = vector.shape_cast %145 : vector<8xf32> to vector<8x1xf32>
    %cst_84 = arith.constant 3.200000e+01 : f32
    %147 = vector.broadcast %cst_84 : f32 to vector<8x1xf32>
    %148 = arith.divf %146, %147 : vector<8x1xf32>
    %149 = vector.broadcast %148 : vector<8x1xf32> to vector<8x32xf32>
    %150 = arith.subf %140, %149 : vector<8x32xf32>
    %151 = vector.broadcast %148 : vector<8x1xf32> to vector<8x32xf32>
    %152 = arith.subf %140, %151 : vector<8x32xf32>
    %153 = arith.mulf %150, %152 : vector<8x32xf32>
    %cst_85 = arith.constant dense<0.000000e+00> : vector<8xf32>
    %154 = vector.multi_reduction <add>, %153, %cst_85 [1] : vector<8x32xf32> to vector<8xf32>
    %155 = vector.shape_cast %154 : vector<8xf32> to vector<8x1xf32>
    %cst_86 = arith.constant 3.200000e+01 : f32
    %156 = vector.broadcast %cst_86 : f32 to vector<8x1xf32>
    %157 = arith.divf %155, %156 : vector<8x1xf32>
    %158 = vector.broadcast %148 : vector<8x1xf32> to vector<8x32xf32>
    %159 = arith.subf %140, %158 : vector<8x32xf32>
    %cst_87 = arith.constant 9.99999974E-6 : f32
    %160 = vector.broadcast %cst_87 : f32 to vector<8x1xf32>
    %161 = arith.addf %157, %160 : vector<8x1xf32>
    %162 = math.rsqrt %161 : vector<8x1xf32>
    %163 = vector.broadcast %162 : vector<8x1xf32> to vector<8x32xf32>
    %164 = arith.mulf %159, %163 : vector<8x32xf32>
    %165 = vector.broadcast %142 : vector<1x32xf32> to vector<8x32xf32>
    %166 = arith.mulf %164, %165 : vector<8x32xf32>
    %167 = vector.broadcast %144 : vector<1x32xf32> to vector<8x32xf32>
    %168 = arith.addf %166, %167 : vector<8x32xf32>
    %c1_88 = arith.constant 1 : index
    %c0_89 = arith.constant 0 : index
    %c0_90 = arith.constant 0 : index
    %169 = vector.load %arg8[%c1_88, %c0_89, %c0_90] : memref<2x32x32xf32, #tpu.memory_space<vmem>>, vector<1x32x32xf32>
    %170 = vector.shape_cast %169 : vector<1x32x32xf32> to vector<32x32xf32>
    %cst_91 = arith.constant dense<0.000000e+00> : vector<8x32xf32>
    %171 = tpu.matmul %168, %170, %cst_91 {dimension_numbers = #tpu.dot_dimension_numbers<[1], [0], [0], [1], [0, 0, 1, 1], [], []>} : vector<8x32xf32>, vector<32x32xf32>, vector<8x32xf32> -> vector<8x32xf32>
    %c1_92 = arith.constant 1 : index
    %c0_93 = arith.constant 0 : index
    %c0_94 = arith.constant 0 : index
    %172 = vector.load %arg9[%c1_92, %c0_93, %c0_94] : memref<2x1x32xf32, #tpu.memory_space<vmem>>, vector<1x1x32xf32>
    %173 = vector.shape_cast %172 : vector<1x1x32xf32> to vector<1x32xf32>
    %174 = vector.broadcast %173 : vector<1x32xf32> to vector<8x32xf32>
    %175 = arith.addf %171, %174 : vector<8x32xf32>
    %cst_95 = arith.constant 0.000000e+00 : f32
    %176 = vector.broadcast %cst_95 : f32 to vector<8x32xf32>
    %177 = arith.maximumf %175, %176 : vector<8x32xf32>
    %c1_96 = arith.constant 1 : index
    %c0_97 = arith.constant 0 : index
    %c0_98 = arith.constant 0 : index
    %178 = vector.load %arg10[%c1_96, %c0_97, %c0_98] : memref<2x32x32xf32, #tpu.memory_space<vmem>>, vector<1x32x32xf32>
    %179 = vector.shape_cast %178 : vector<1x32x32xf32> to vector<32x32xf32>
    %cst_99 = arith.constant dense<0.000000e+00> : vector<8x32xf32>
    %180 = tpu.matmul %177, %179, %cst_99 {dimension_numbers = #tpu.dot_dimension_numbers<[1], [0], [0], [1], [0, 0, 1, 1], [], []>} : vector<8x32xf32>, vector<32x32xf32>, vector<8x32xf32> -> vector<8x32xf32>
    %c1_100 = arith.constant 1 : index
    %c0_101 = arith.constant 0 : index
    %c0_102 = arith.constant 0 : index
    %181 = vector.load %arg11[%c1_100, %c0_101, %c0_102] : memref<2x1x32xf32, #tpu.memory_space<vmem>>, vector<1x1x32xf32>
    %182 = vector.shape_cast %181 : vector<1x1x32xf32> to vector<1x32xf32>
    %183 = vector.broadcast %182 : vector<1x32xf32> to vector<8x32xf32>
    %184 = arith.addf %180, %183 : vector<8x32xf32>
    %185 = arith.addf %168, %184 : vector<8x32xf32>
    %c1_103 = arith.constant 1 : index
    %c0_104 = arith.constant 0 : index
    %c0_105 = arith.constant 0 : index
    %186 = vector.load %arg12[%c1_103, %c0_104, %c0_105] : memref<2x1x32xf32, #tpu.memory_space<vmem>>, vector<1x1x32xf32>
    %187 = vector.shape_cast %186 : vector<1x1x32xf32> to vector<1x32xf32>
    %c1_106 = arith.constant 1 : index
    %c0_107 = arith.constant 0 : index
    %c0_108 = arith.constant 0 : index
    %188 = vector.load %arg13[%c1_106, %c0_107, %c0_108] : memref<2x1x32xf32, #tpu.memory_space<vmem>>, vector<1x1x32xf32>
    %189 = vector.shape_cast %188 : vector<1x1x32xf32> to vector<1x32xf32>
    %cst_109 = arith.constant dense<0.000000e+00> : vector<8xf32>
    %190 = vector.multi_reduction <add>, %185, %cst_109 [1] : vector<8x32xf32> to vector<8xf32>
    %191 = vector.shape_cast %190 : vector<8xf32> to vector<8x1xf32>
    %cst_110 = arith.constant 3.200000e+01 : f32
    %192 = vector.broadcast %cst_110 : f32 to vector<8x1xf32>
    %193 = arith.divf %191, %192 : vector<8x1xf32>
    %194 = vector.broadcast %193 : vector<8x1xf32> to vector<8x32xf32>
    %195 = arith.subf %185, %194 : vector<8x32xf32>
    %196 = vector.broadcast %193 : vector<8x1xf32> to vector<8x32xf32>
    %197 = arith.subf %185, %196 : vector<8x32xf32>
    %198 = arith.mulf %195, %197 : vector<8x32xf32>
    %cst_111 = arith.constant dense<0.000000e+00> : vector<8xf32>
    %199 = vector.multi_reduction <add>, %198, %cst_111 [1] : vector<8x32xf32> to vector<8xf32>
    %200 = vector.shape_cast %199 : vector<8xf32> to vector<8x1xf32>
    %cst_112 = arith.constant 3.200000e+01 : f32
    %201 = vector.broadcast %cst_112 : f32 to vector<8x1xf32>
    %202 = arith.divf %200, %201 : vector<8x1xf32>
    %203 = vector.broadcast %193 : vector<8x1xf32> to vector<8x32xf32>
    %204 = arith.subf %185, %203 : vector<8x32xf32>
    %cst_113 = arith.constant 9.99999974E-6 : f32
    %205 = vector.broadcast %cst_113 : f32 to vector<8x1xf32>
    %206 = arith.addf %202, %205 : vector<8x1xf32>
    %207 = math.rsqrt %206 : vector<8x1xf32>
    %208 = vector.broadcast %207 : vector<8x1xf32> to vector<8x32xf32>
    %209 = arith.mulf %204, %208 : vector<8x32xf32>
    %210 = vector.broadcast %187 : vector<1x32xf32> to vector<8x32xf32>
    %211 = arith.mulf %209, %210 : vector<8x32xf32>
    %212 = vector.broadcast %189 : vector<1x32xf32> to vector<8x32xf32>
    %213 = arith.addf %211, %212 : vector<8x32xf32>
    %c0_114 = arith.constant 0 : index
    %c0_115 = arith.constant 0 : index
    %214 = vector.load %arg14[%c0_114, %c0_115] : memref<32x16xf32, #tpu.memory_space<vmem>>, vector<32x16xf32>
    %cst_116 = arith.constant dense<0.000000e+00> : vector<8x16xf32>
    %215 = tpu.matmul %213, %214, %cst_116 {dimension_numbers = #tpu.dot_dimension_numbers<[1], [0], [0], [1], [0, 0, 1, 1], [], []>} : vector<8x32xf32>, vector<32x16xf32>, vector<8x16xf32> -> vector<8x16xf32>
    %c0_117 = arith.constant 0 : index
    %c0_118 = arith.constant 0 : index
    %216 = vector.load %arg15[%c0_117, %c0_118] : memref<1x16xf32, #tpu.memory_space<vmem>>, vector<1x16xf32>
    %217 = vector.broadcast %216 : vector<1x16xf32> to vector<8x16xf32>
    %218 = arith.addf %215, %217 : vector<8x16xf32>
    %c0_119 = arith.constant 0 : index
    %c0_120 = arith.constant 0 : index
    %c0_121 = arith.constant 0 : index
    %219 = vector.load %arg18[%c0_119, %c0_120, %c0_121] : memref<1x8x16xf32, #tpu.memory_space<vmem>>, vector<1x8x16xf32>
    %220 = vector.shape_cast %219 : vector<1x8x16xf32> to vector<8x16xf32>
    %221 = vector.shape_cast %218 : vector<8x16xf32> to vector<1x8x16xf32>
    tpu.vector_store %arg18[%c0_119, %c0_120, %c0_121], %221 {strides = array<i32>} : memref<1x8x16xf32, #tpu.memory_space<vmem>>, vector<1x8x16xf32>,
    return
  }
  func.func @transform_0(%arg0: i32) -> (i32, i32, i32) {
    %c0_i32 = arith.constant 0 : i32
    %c0_i32_0 = arith.constant 0 : i32
    %c0_i32_1 = arith.constant 0 : i32
    return %arg0, %c0_i32, %c0_i32_0 : i32, i32, i32
  }
  func.func @transform_1(%arg0: i32) -> (i32, i32, i32) {
    %c0_i32 = arith.constant 0 : i32
    %c0_i32_0 = arith.constant 0 : i32
    %c0_i32_1 = arith.constant 0 : i32
    %c0_i32_2 = arith.constant 0 : i32
    return %c0_i32, %c0_i32_0, %c0_i32_1 : i32, i32, i32
  }
  func.func @transform_2(%arg0: i32) -> (i32, i32, i32) {
    %c0_i32 = arith.constant 0 : i32
    %c0_i32_0 = arith.constant 0 : i32
    %c0_i32_1 = arith.constant 0 : i32
    %c0_i32_2 = arith.constant 0 : i32
    return %c0_i32, %c0_i32_0, %c0_i32_1 : i32, i32, i32
  }
  func.func @transform_3(%arg0: i32) -> (i32, i32, i32) {
    %c0_i32 = arith.constant 0 : i32
    %c0_i32_0 = arith.constant 0 : i32
    %c0_i32_1 = arith.constant 0 : i32
    %c0_i32_2 = arith.constant 0 : i32
    return %c0_i32, %c0_i32_0, %c0_i32_1 : i32, i32, i32
  }
  func.func @transform_4(%arg0: i32) -> (i32, i32, i32) {
    %c0_i32 = arith.constant 0 : i32
    %c0_i32_0 = arith.constant 0 : i32
    %c0_i32_1 = arith.constant 0 : i32
    %c0_i32_2 = arith.constant 0 : i32
    return %c0_i32, %c0_i32_0, %c0_i32_1 : i32, i32, i32
  }
  func.func @transform_5(%arg0: i32) -> (i32, i32, i32) {
    %c0_i32 = arith.constant 0 : i32
    %c0_i32_0 = arith.constant 0 : i32
    %c0_i32_1 = arith.constant 0 : i32
    %c0_i32_2 = arith.constant 0 : i32
    return %c0_i32, %c0_i32_0, %c0_i32_1 : i32, i32, i32
  }
  func.func @transform_6(%arg0: i32) -> (i32, i32, i32) {
    %c0_i32 = arith.constant 0 : i32
    %c0_i32_0 = arith.constant 0 : i32
    %c0_i32_1 = arith.constant 0 : i32
    %c0_i32_2 = arith.constant 0 : i32
    return %c0_i32, %c0_i32_0, %c0_i32_1 : i32, i32, i32
  }
  func.func @transform_7(%arg0: i32) -> (i32, i32, i32) {
    %c0_i32 = arith.constant 0 : i32
    %c0_i32_0 = arith.constant 0 : i32
    %c0_i32_1 = arith.constant 0 : i32
    %c0_i32_2 = arith.constant 0 : i32
    return %c0_i32, %c0_i32_0, %c0_i32_1 : i32, i32, i32
  }
  func.func @transform_8(%arg0: i32) -> (i32, i32, i32) {
    %c0_i32 = arith.constant 0 : i32
    %c0_i32_0 = arith.constant 0 : i32
    %c0_i32_1 = arith.constant 0 : i32
    %c0_i32_2 = arith.constant 0 : i32
    return %c0_i32, %c0_i32_0, %c0_i32_1 : i32, i32, i32
  }
  func.func @transform_9(%arg0: i32) -> (i32, i32, i32) {
    %c0_i32 = arith.constant 0 : i32
    %c0_i32_0 = arith.constant 0 : i32
    %c0_i32_1 = arith.constant 0 : i32
    %c0_i32_2 = arith.constant 0 : i32
    return %c0_i32, %c0_i32_0, %c0_i32_1 : i32, i32, i32
  }
  func.func @transform_10(%arg0: i32) -> (i32, i32, i32) {
    %c0_i32 = arith.constant 0 : i32
    %c0_i32_0 = arith.constant 0 : i32
    %c0_i32_1 = arith.constant 0 : i32
    %c0_i32_2 = arith.constant 0 : i32
    return %c0_i32, %c0_i32_0, %c0_i32_1 : i32, i32, i32
  }
  func.func @transform_11(%arg0: i32) -> (i32, i32, i32) {
    %c0_i32 = arith.constant 0 : i32
    %c0_i32_0 = arith.constant 0 : i32
    %c0_i32_1 = arith.constant 0 : i32
    %c0_i32_2 = arith.constant 0 : i32
    return %c0_i32, %c0_i32_0, %c0_i32_1 : i32, i32, i32
  }
  func.func @transform_12(%arg0: i32) -> (i32, i32, i32) {
    %c0_i32 = arith.constant 0 : i32
    %c0_i32_0 = arith.constant 0 : i32
    %c0_i32_1 = arith.constant 0 : i32
    %c0_i32_2 = arith.constant 0 : i32
    return %c0_i32, %c0_i32_0, %c0_i32_1 : i32, i32, i32
  }
  func.func @transform_13(%arg0: i32) -> (i32, i32) {
    %c0_i32 = arith.constant 0 : i32
    %c0_i32_0 = arith.constant 0 : i32
    %c0_i32_1 = arith.constant 0 : i32
    return %c0_i32, %c0_i32_0 : i32, i32
  }
  func.func @transform_14(%arg0: i32) -> (i32, i32) {
    %c0_i32 = arith.constant 0 : i32
    %c0_i32_0 = arith.constant 0 : i32
    %c0_i32_1 = arith.constant 0 : i32
    return %c0_i32, %c0_i32_0 : i32, i32
  }
  func.func @transform_15(%arg0: i32) -> (i32, i32) {
    %c0_i32 = arith.constant 0 : i32
    %c0_i32_0 = arith.constant 0 : i32
    %c0_i32_1 = arith.constant 0 : i32
    return %c0_i32, %c0_i32_0 : i32, i32
  }
  func.func @transform_16(%arg0: i32) -> (i32, i32) {
    %c0_i32 = arith.constant 0 : i32
    %c0_i32_0 = arith.constant 0 : i32
    %c0_i32_1 = arith.constant 0 : i32
    return %c0_i32, %c0_i32_0 : i32, i32
  }
  func.func @transform_17(%arg0: i32) -> (i32, i32, i32) {
    %c0_i32 = arith.constant 0 : i32
    %c0_i32_0 = arith.constant 0 : i32
    %c0_i32_1 = arith.constant 0 : i32
    return %arg0, %c0_i32, %c0_i32_0 : i32, i32, i32
  }
}

</mosaic_0001>

<llo_original>
// kernel: tpu_custom_call.1
$region0: #{tpu_custom_call.1}
  #allocation0 [shape = 'u32[]', space=smem, size = 0x4, offset = 0x4, fixed_abs, tag = 'smem constant byte address 0x4 - core index']
  #allocation1 [shape = 'u32[144,128]{1,0:T(1,128)}', space=vmem, size = 0x12000, scoped, tag = 'internal scratch']
  %s0 = inlined_call_operand.hbm [shape: f32[2,8,32], index: 0, kind: input, shape index: {}]
  %s1 = inlined_call_operand.vmem [shape: f32[2,32,96], index: 1, kind: input, shape index: {}]
  %s2 = inlined_call_operand.hbm [shape: f32[2,1,96], index: 2, kind: input, shape index: {}]
  %s3 = inlined_call_operand.vmem [shape: f32[2,32,32], index: 3, kind: input, shape index: {}]
  %s4 = inlined_call_operand.hbm [shape: f32[2,1,32], index: 4, kind: input, shape index: {}]
  %s5 = inlined_call_operand.hbm [shape: f32[2,1,32], index: 5, kind: input, shape index: {}]
  %s6 = inlined_call_operand.hbm [shape: f32[2,1,32], index: 6, kind: input, shape index: {}]
  %s7 = inlined_call_operand.hbm [shape: f32[2,32,32], index: 7, kind: input, shape index: {}]
  %s8 = inlined_call_operand.hbm [shape: f32[2,1,32], index: 8, kind: input, shape index: {}]
  %s9 = inlined_call_operand.hbm [shape: f32[2,32,32], index: 9, kind: input, shape index: {}]
  %s10 = inlined_call_operand.vmem [shape: f32[2,1,32], index: 10, kind: input, shape index: {}]
  %s11 = inlined_call_operand.vmem [shape: f32[2,1,32], index: 11, kind: input, shape index: {}]
  %s12 = inlined_call_operand.hbm [shape: f32[2,1,32], index: 12, kind: input, shape index: {}]
  %s13 = inlined_call_operand.vmem [shape: f32[32,16], index: 13, kind: input, shape index: {}]
  %s14 = inlined_call_operand.vmem [shape: f32[1,16], index: 14, kind: input, shape index: {}]
  %s15 = inlined_call_operand.vmem [shape: f32[64,32], index: 15, kind: input, shape index: {}]
  %s16 = inlined_call_operand.hbm [shape: f32[64,64], index: 16, kind: input, shape index: {}]
  %s17 = inlined_call_operand.hbm [shape: f32[2,8,16], index: 17, kind: output, shape index: {}]
  %s18 = sld [smem:[#allocation0]]
  $region141: #{tpu_custom_call.1} parent=0
    _
  %s20 = ssub.s32 1, %s18
  %s21 = scalar_select 0, %s20, %s18
  $region1: #{tpu_custom_call.1} parent=0
    #allocation2 [shape = 'u8[8192]{0}', space=vmem, size = 0x2000, scoped, tag = 'input window, operand 0']
    #allocation3 [shape = 's32[2]{0}', space=sflag, size = 0x8, scoped, tag = 'scoped memory for tpu_custom_call.1']
    #allocation4 [shape = 's32[2]{0}', space=sflag, size = 0x8, scoped, tag = 'scoped memory for tpu_custom_call.1']
    #allocation5 [shape = 'u8[1024]{0}', space=vmem, size = 0x400, scoped, tag = 'input window, operand 2, single buffered']
    #allocation6 [shape = 's32[1]{0}', space=sflag, size = 0x4, scoped, tag = 'scoped memory for tpu_custom_call.1']
    #allocation7 [shape = 'u8[1024]{0}', space=vmem, size = 0x400, scoped, tag = 'input window, operand 4, single buffered']
    #allocation8 [shape = 'u8[1024]{0}', space=vmem, size = 0x400, scoped, tag = 'input window, operand 5, single buffered']
    #allocation9 [shape = 's32[1]{0}', space=sflag, size = 0x4, scoped, tag = 'scoped memory for tpu_custom_call.1']
    #allocation10 [shape = 'u8[1024]{0}', space=vmem, size = 0x400, scoped, tag = 'input window, operand 6, single buffered']
    #allocation11 [shape = 'u8[32768]{0}', space=vmem, size = 0x8000, scoped, tag = 'input window, operand 7, single buffered']
    #allocation12 [shape = 's32[1]{0}', space=sflag, size = 0x4, scoped, tag = 'scoped memory for tpu_custom_call.1']
    #allocation13 [shape = 'u8[1024]{0}', space=vmem, size = 0x400, scoped, tag = 'input window, operand 8, single buffered']
    #allocation14 [shape = 'u8[32768]{0}', space=vmem, size = 0x8000, scoped, tag = 'input window, operand 9, single buffered']
    #allocation15 [shape = 's32[1]{0}', space=sflag, size = 0x4, scoped, tag = 'scoped memory for tpu_custom_call.1']
    #allocation16 [shape = 'u8[1024]{0}', space=vmem, size = 0x400, scoped, tag = 'input window, operand 12, single buffered']
    #allocation17 [shape = 'u8[32768]{0}', space=vmem, size = 0x8000, scoped, tag = 'input window, operand 16, single buffered']
    #allocation18 [shape = 's32[1]{0}', space=sflag, size = 0x4, scoped, tag = 'scoped memory for tpu_custom_call.1']
    #allocation19 [shape = 'u8[8192]{0}', space=vmem, size = 0x2000, scoped, tag = 'output window, operand 0']
    %22 = vsyncpa [#allocation3], 0
    %s23 = scalar_lea.sflag [#allocation3], 1
    %24 = vsyncpa %s23, 0
    %25 = vsyncpa [#allocation6], 0
    %26 = vsyncpa [#allocation9], 0
    %27 = vsyncpa [#allocation12], 0
    %28 = vsyncpa [#allocation15], 0
    %29 = vsyncpa [#allocation18], 0
    %30 = vsyncpa [#allocation4], 0
    %s31 = scalar_lea.sflag [#allocation4], 1
    %32 = vsyncpa %s31, 0
    loop: start=0, step=1, limit=4
    $region2: #{tpu_custom_call.1} parent=1 // loop_pre_header
      _
    $region3: #{tpu_custom_call.1} parent=1 // loop_header
      %s34 = sphi 0, %s38
      %p35 = scmp.ge.s32.totalorder %s34, 4
      %s44 = sphi 0, %s46
      %s47 = sphi 0, %s44
      %s48 = sphi 0, %s47
      %s64 = sphi 0, %s48
      %s68 = sphi 0, %s68
      %s70 = sphi 0, %s68
      %s71 = sphi 0, %s70
      %s85 = sphi 0, %s71
      %s89 = sphi 0, %s89
      %s91 = sphi 0, %s89
      %s92 = sphi 0, %s91
      %s106 = sphi 0, %s92
      %s110 = sphi 0, %s110
      %s112 = sphi 0, %s110
      %s113 = sphi 0, %s112
      %s127 = sphi 0, %s113
      %s131 = sphi 0, %s131
      %s133 = sphi 0, %s131
      %s134 = sphi 0, %s133
      %s148 = sphi 0, %s134
      %s152 = sphi 0, %s152
      %s154 = sphi 0, %s152
      %s155 = sphi 0, %s154
      %s169 = sphi 0, %s155
      %s173 = sphi 0, %s173
      %s175 = sphi 0, %s173
      %s176 = sphi 0, %s175
      %s190 = sphi 0, %s176
      %s194 = sphi 0, %s194
      %s196 = sphi 0, %s194
      %s197 = sphi 0, %s196
      %s211 = sphi 0, %s197
      %s215 = sphi 0, %s215
      %s217 = sphi 0, %s215
      %s218 = sphi 0, %s217
      %s232 = sphi 0, %s218
      %s236 = sphi 0, %s236
      %s238 = sphi 0, %s236
      %s239 = sphi 0, %s238
      %s253 = sphi 0, %s239
      %s257 = sphi 0, %s257
      %s259 = sphi 0, %s257
      %s260 = sphi 0, %s259
      %s274 = sphi 0, %s260
      %s278 = sphi 0, %s278
      %s280 = sphi 0, %s278
      %s281 = sphi 0, %s280
      %s295 = sphi 0, %s281
      %s299 = sphi 0, %s299
      %s301 = sphi 0, %s299
      %s302 = sphi 0, %s301
      %s316 = sphi 0, %s302
      %s320 = sphi 0, %s320
      %s322 = sphi 0, %s320
      %s323 = sphi 0, %s322
      %s337 = sphi 0, %s323
      %s341 = sphi 0, %s341
      %s343 = sphi 0, %s341
      %s344 = sphi 0, %s343
      %s358 = sphi 0, %s344
      %s362 = sphi 0, %s362
      %s364 = sphi 0, %s362
      %s365 = sphi 0, %s364
      %s379 = sphi 0, %s365
      %s383 = sphi 0, %s383
      %s385 = sphi 0, %s383
      %s386 = sphi 0, %s385
      %s400 = sphi 0, %s386
      %s406 = sphi 0, %s408
      %s409 = sphi 0, %s406
      %s410 = sphi 0, %s409
      %s426 = sphi 0, %s410
    $region4: #{tpu_custom_call.1} parent=1 // loop_header_branch
      %37 = sbr.rel (%p35) target = $region8
    $region5: #{tpu_custom_call.1} parent=1 // loop_body
      %s39 = ssub.s32 %s34, 1
      %s40 = ssub.s32 %s34, 2
      %s41 = sadd.s32 %s34, 1
      %s42 = ssub.s32 %s34, %s41
      %p43 = scmp.eq.s32.totalorder %s42, 0
      %s45 = sadd.s32 %s44, 1
      %s46 = scalar_select %p43, %s44, %s45
      %p49 = pneg %p43
      %p50 = scmp.eq.s32.totalorder %s34, 1
      %p51 = por %p49, %p50
      %p52 = scmp.ne.s32.totalorder %s44, %s47
      %p53 = scmp.eq.s32.totalorder %s34, 0
      %p54 = por %p52, %p53
      %p55 = scmp.ne.s32.totalorder %s44, %s47
      %p56 = scmp.eq.s32.totalorder %s39, 1
      %p57 = por %p55, %p56
      %p58 = scmp.ne.s32.totalorder %s47, %s48
      %p59 = scmp.eq.s32.totalorder %s39, 0
      %p60 = por %p58, %p59
      %p61 = scmp.ne.s32.totalorder %s47, %s48
      %p62 = scmp.eq.s32.totalorder %s40, 1
      %p63 = por %p61, %p62
      %p65 = scmp.ne.s32.totalorder %s48, %s64
      %p66 = scmp.eq.s32.totalorder %s40, 0
      %p67 = por %p65, %p66
      %s69 = sadd.s32 %s68, 1
      %p72 = scmp.eq.s32.totalorder %s34, 1
      %p73 = scmp.ne.s32.totalorder %s68, %s70
      %p74 = scmp.eq.s32.totalorder %s34, 0
      %p75 = por %p73, %p74
      %p76 = scmp.ne.s32.totalorder %s68, %s70
      %p77 = scmp.eq.s32.totalorder %s39, 1
      %p78 = por %p76, %p77
      %p79 = scmp.ne.s32.totalorder %s70, %s71
      %p80 = scmp.eq.s32.totalorder %s39, 0
      %p81 = por %p79, %p80
      %p82 = scmp.ne.s32.totalorder %s70, %s71
      %p83 = scmp.eq.s32.totalorder %s40, 1
      %p84 = por %p82, %p83
      %p86 = scmp.ne.s32.totalorder %s71, %s85
      %p87 = scmp.eq.s32.totalorder %s40, 0
      %p88 = por %p86, %p87
      %s90 = sadd.s32 %s89, 1
      %p93 = scmp.eq.s32.totalorder %s34, 1
      %p94 = scmp.ne.s32.totalorder %s89, %s91
      %p95 = scmp.eq.s32.totalorder %s34, 0
      %p96 = por %p94, %p95
      %p97 = scmp.ne.s32.totalorder %s89, %s91
      %p98 = scmp.eq.s32.totalorder %s39, 1
      %p99 = por %p97, %p98
      %p100 = scmp.ne.s32.totalorder %s91, %s92
      %p101 = scmp.eq.s32.totalorder %s39, 0
      %p102 = por %p100, %p101
      %p103 = scmp.ne.s32.totalorder %s91, %s92
      %p104 = scmp.eq.s32.totalorder %s40, 1
      %p105 = por %p103, %p104
      %p107 = scmp.ne.s32.totalorder %s92, %s106
      %p108 = scmp.eq.s32.totalorder %s40, 0
      %p109 = por %p107, %p108
      %s111 = sadd.s32 %s110, 1
      %p114 = scmp.eq.s32.totalorder %s34, 1
      %p115 = scmp.ne.s32.totalorder %s110, %s112
      %p116 = scmp.eq.s32.totalorder %s34, 0
      %p117 = por %p115, %p116
      %p118 = scmp.ne.s32.totalorder %s110, %s112
      %p119 = scmp.eq.s32.totalorder %s39, 1
      %p120 = por %p118, %p119
      %p121 = scmp.ne.s32.totalorder %s112, %s113
      %p122 = scmp.eq.s32.totalorder %s39, 0
      %p123 = por %p121, %p122
      %p124 = scmp.ne.s32.totalorder %s112, %s113
      %p125 = scmp.eq.s32.totalorder %s40, 1
      %p126 = por %p124, %p125
      %p128 = scmp.ne.s32.totalorder %s113, %s127
      %p129 = scmp.eq.s32.totalorder %s40, 0
      %p130 = por %p128, %p129
      %s132 = sadd.s32 %s131, 1
      %p135 = scmp.eq.s32.totalorder %s34, 1
      %p136 = scmp.ne.s32.totalorder %s131, %s133
      %p137 = scmp.eq.s32.totalorder %s34, 0
      %p138 = por %p136, %p137
      %p139 = scmp.ne.s32.totalorder %s131, %s133
      %p140 = scmp.eq.s32.totalorder %s39, 1
      %p141 = por %p139, %p140
      %p142 = scmp.ne.s32.totalorder %s133, %s134
      %p143 = scmp.eq.s32.totalorder %s39, 0
      %p144 = por %p142, %p143
      %p145 = scmp.ne.s32.totalorder %s133, %s134
      %p146 = scmp.eq.s32.totalorder %s40, 1
      %p147 = por %p145, %p146
      %p149 = scmp.ne.s32.totalorder %s134, %s148
      %p150 = scmp.eq.s32.totalorder %s40, 0
      %p151 = por %p149, %p150
      %s153 = sadd.s32 %s152, 1
      %p156 = scmp.eq.s32.totalorder %s34, 1
      %p157 = scmp.ne.s32.totalorder %s152, %s154
      %p158 = scmp.eq.s32.totalorder %s34, 0
      %p159 = por %p157, %p158
      %p160 = scmp.ne.s32.totalorder %s152, %s154
      %p161 = scmp.eq.s32.totalorder %s39, 1
      %p162 = por %p160, %p161
      %p163 = scmp.ne.s32.totalorder %s154, %s155
      %p164 = scmp.eq.s32.totalorder %s39, 0
      %p165 = por %p163, %p164
      %p166 = scmp.ne.s32.totalorder %s154, %s155
      %p167 = scmp.eq.s32.totalorder %s40, 1
      %p168 = por %p166, %p167
      %p170 = scmp.ne.s32.totalorder %s155, %s169
      %p171 = scmp.eq.s32.totalorder %s40, 0
      %p172 = por %p170, %p171
      %s174 = sadd.s32 %s173, 1
      %p177 = scmp.eq.s32.totalorder %s34, 1
      %p178 = scmp.ne.s32.totalorder %s173, %s175
      %p179 = scmp.eq.s32.totalorder %s34, 0
      %p180 = por %p178, %p179
      %p181 = scmp.ne.s32.totalorder %s173, %s175
      %p182 = scmp.eq.s32.totalorder %s39, 1
      %p183 = por %p181, %p182
      %p184 = scmp.ne.s32.totalorder %s175, %s176
      %p185 = scmp.eq.s32.totalorder %s39, 0
      %p186 = por %p184, %p185
      %p187 = scmp.ne.s32.totalorder %s175, %s176
      %p188 = scmp.eq.s32.totalorder %s40, 1
      %p189 = por %p187, %p188
      %p191 = scmp.ne.s32.totalorder %s176, %s190
      %p192 = scmp.eq.s32.totalorder %s40, 0
      %p193 = por %p191, %p192
      %s195 = sadd.s32 %s194, 1
      %p198 = scmp.eq.s32.totalorder %s34, 1
      %p199 = scmp.ne.s32.totalorder %s194, %s196
      %p200 = scmp.eq.s32.totalorder %s34, 0
      %p201 = por %p199, %p200
      %p202 = scmp.ne.s32.totalorder %s194, %s196
      %p203 = scmp.eq.s32.totalorder %s39, 1
      %p204 = por %p202, %p203
      %p205 = scmp.ne.s32.totalorder %s196, %s197
      %p206 = scmp.eq.s32.totalorder %s39, 0
      %p207 = por %p205, %p206
      %p208 = scmp.ne.s32.totalorder %s196, %s197
      %p209 = scmp.eq.s32.totalorder %s40, 1
      %p210 = por %p208, %p209
      %p212 = scmp.ne.s32.totalorder %s197, %s211
      %p213 = scmp.eq.s32.totalorder %s40, 0
      %p214 = por %p212, %p213
      %s216 = sadd.s32 %s215, 1
      %p219 = scmp.eq.s32.totalorder %s34, 1
      %p220 = scmp.ne.s32.totalorder %s215, %s217
      %p221 = scmp.eq.s32.totalorder %s34, 0
      %p222 = por %p220, %p221
      %p223 = scmp.ne.s32.totalorder %s215, %s217
      %p224 = scmp.eq.s32.totalorder %s39, 1
      %p225 = por %p223, %p224
      %p226 = scmp.ne.s32.totalorder %s217, %s218
      %p227 = scmp.eq.s32.totalorder %s39, 0
      %p228 = por %p226, %p227
      %p229 = scmp.ne.s32.totalorder %s217, %s218
      %p230 = scmp.eq.s32.totalorder %s40, 1
      %p231 = por %p229, %p230
      %p233 = scmp.ne.s32.totalorder %s218, %s232
      %p234 = scmp.eq.s32.totalorder %s40, 0
      %p235 = por %p233, %p234
      %s237 = sadd.s32 %s236, 1
      %p240 = scmp.eq.s32.totalorder %s34, 1
      %p241 = scmp.ne.s32.totalorder %s236, %s238
      %p242 = scmp.eq.s32.totalorder %s34, 0
      %p243 = por %p241, %p242
      %p244 = scmp.ne.s32.totalorder %s236, %s238
      %p245 = scmp.eq.s32.totalorder %s39, 1
      %p246 = por %p244, %p245
      %p247 = scmp.ne.s32.totalorder %s238, %s239
      %p248 = scmp.eq.s32.totalorder %s39, 0
      %p249 = por %p247, %p248
      %p250 = scmp.ne.s32.totalorder %s238, %s239
      %p251 = scmp.eq.s32.totalorder %s40, 1
      %p252 = por %p250, %p251
      %p254 = scmp.ne.s32.totalorder %s239, %s253
      %p255 = scmp.eq.s32.totalorder %s40, 0
      %p256 = por %p254, %p255
      %s258 = sadd.s32 %s257, 1
      %p261 = scmp.eq.s32.totalorder %s34, 1
      %p262 = scmp.ne.s32.totalorder %s257, %s259
      %p263 = scmp.eq.s32.totalorder %s34, 0
      %p264 = por %p262, %p263
      %p265 = scmp.ne.s32.totalorder %s257, %s259
      %p266 = scmp.eq.s32.totalorder %s39, 1
      %p267 = por %p265, %p266
      %p268 = scmp.ne.s32.totalorder %s259, %s260
      %p269 = scmp.eq.s32.totalorder %s39, 0
      %p270 = por %p268, %p269
      %p271 = scmp.ne.s32.totalorder %s259, %s260
      %p272 = scmp.eq.s32.totalorder %s40, 1
      %p273 = por %p271, %p272
      %p275 = scmp.ne.s32.totalorder %s260, %s274
      %p276 = scmp.eq.s32.totalorder %s40, 0
      %p277 = por %p275, %p276
      %s279 = sadd.s32 %s278, 1
      %p282 = scmp.eq.s32.totalorder %s34, 1
      %p283 = scmp.ne.s32.totalorder %s278, %s280
      %p284 = scmp.eq.s32.totalorder %s34, 0
      %p285 = por %p283, %p284
      %p286 = scmp.ne.s32.totalorder %s278, %s280
      %p287 = scmp.eq.s32.totalorder %s39, 1
      %p288 = por %p286, %p287
      %p289 = scmp.ne.s32.totalorder %s280, %s281
      %p290 = scmp.eq.s32.totalorder %s39, 0
      %p291 = por %p289, %p290
      %p292 = scmp.ne.s32.totalorder %s280, %s281
      %p293 = scmp.eq.s32.totalorder %s40, 1
      %p294 = por %p292, %p293
      %p296 = scmp.ne.s32.totalorder %s281, %s295
      %p297 = scmp.eq.s32.totalorder %s40, 0
      %p298 = por %p296, %p297
      %s300 = sadd.s32 %s299, 1
      %p303 = scmp.eq.s32.totalorder %s34, 1
      %p304 = scmp.ne.s32.totalorder %s299, %s301
      %p305 = scmp.eq.s32.totalorder %s34, 0
      %p306 = por %p304, %p305
      %p307 = scmp.ne.s32.totalorder %s299, %s301
      %p308 = scmp.eq.s32.totalorder %s39, 1
      %p309 = por %p307, %p308
      %p310 = scmp.ne.s32.totalorder %s301, %s302
      %p311 = scmp.eq.s32.totalorder %s39, 0
      %p312 = por %p310, %p311
      %p313 = scmp.ne.s32.totalorder %s301, %s302
      %p314 = scmp.eq.s32.totalorder %s40, 1
      %p315 = por %p313, %p314
      %p317 = scmp.ne.s32.totalorder %s302, %s316
      %p318 = scmp.eq.s32.totalorder %s40, 0
      %p319 = por %p317, %p318
      %s321 = sadd.s32 %s320, 1
      %p324 = scmp.eq.s32.totalorder %s34, 1
      %p325 = scmp.ne.s32.totalorder %s320, %s322
      %p326 = scmp.eq.s32.totalorder %s34, 0
      %p327 = por %p325, %p326
      %p328 = scmp.ne.s32.totalorder %s320, %s322
      %p329 = scmp.eq.s32.totalorder %s39, 1
      %p330 = por %p328, %p329
      %p331 = scmp.ne.s32.totalorder %s322, %s323
      %p332 = scmp.eq.s32.totalorder %s39, 0
      %p333 = por %p331, %p332
      %p334 = scmp.ne.s32.totalorder %s322, %s323
      %p335 = scmp.eq.s32.totalorder %s40, 1
      %p336 = por %p334, %p335
      %p338 = scmp.ne.s32.totalorder %s323, %s337
      %p339 = scmp.eq.s32.totalorder %s40, 0
      %p340 = por %p338, %p339
      %s342 = sadd.s32 %s341, 1
      %p345 = scmp.eq.s32.totalorder %s34, 1
      %p346 = scmp.ne.s32.totalorder %s341, %s343
      %p347 = scmp.eq.s32.totalorder %s34, 0
      %p348 = por %p346, %p347
      %p349 = scmp.ne.s32.totalorder %s341, %s343
      %p350 = scmp.eq.s32.totalorder %s39, 1
      %p351 = por %p349, %p350
      %p352 = scmp.ne.s32.totalorder %s343, %s344
      %p353 = scmp.eq.s32.totalorder %s39, 0
      %p354 = por %p352, %p353
      %p355 = scmp.ne.s32.totalorder %s343, %s344
      %p356 = scmp.eq.s32.totalorder %s40, 1
      %p357 = por %p355, %p356
      %p359 = scmp.ne.s32.totalorder %s344, %s358
      %p360 = scmp.eq.s32.totalorder %s40, 0
      %p361 = por %p359, %p360
      %s363 = sadd.s32 %s362, 1
      %p366 = scmp.eq.s32.totalorder %s34, 1
      %p367 = scmp.ne.s32.totalorder %s362, %s364
      %p368 = scmp.eq.s32.totalorder %s34, 0
      %p369 = por %p367, %p368
      %p370 = scmp.ne.s32.totalorder %s362, %s364
      %p371 = scmp.eq.s32.totalorder %s39, 1
      %p372 = por %p370, %p371
      %p373 = scmp.ne.s32.totalorder %s364, %s365
      %p374 = scmp.eq.s32.totalorder %s39, 0
      %p375 = por %p373, %p374
      %p376 = scmp.ne.s32.totalorder %s364, %s365
      %p377 = scmp.eq.s32.totalorder %s40, 1
      %p378 = por %p376, %p377
      %p380 = scmp.ne.s32.totalorder %s365, %s379
      %p381 = scmp.eq.s32.totalorder %s40, 0
      %p382 = por %p380, %p381
      %s384 = sadd.s32 %s383, 1
      %p387 = scmp.eq.s32.totalorder %s34, 1
      %p388 = scmp.ne.s32.totalorder %s383, %s385
      %p389 = scmp.eq.s32.totalorder %s34, 0
      %p390 = por %p388, %p389
      %p391 = scmp.ne.s32.totalorder %s383, %s385
      %p392 = scmp.eq.s32.totalorder %s39, 1
      %p393 = por %p391, %p392
      %p394 = scmp.ne.s32.totalorder %s385, %s386
      %p395 = scmp.eq.s32.totalorder %s39, 0
      %p396 = por %p394, %p395
      %p397 = scmp.ne.s32.totalorder %s385, %s386
      %p398 = scmp.eq.s32.totalorder %s40, 1
      %p399 = por %p397, %p398
      %p401 = scmp.ne.s32.totalorder %s386, %s400
      %p402 = scmp.eq.s32.totalorder %s40, 0
      %p403 = por %p401, %p402
      %s404 = ssub.s32 %s34, %s41
      %p405 = scmp.eq.s32.totalorder %s404, 0
      %s407 = sadd.s32 %s406, 1
      %s408 = scalar_select %p405, %s406, %s407
      %p411 = pneg %p405
      %p412 = scmp.eq.s32.totalorder %s34, 1
      %p413 = por %p411, %p412
      %p414 = scmp.ne.s32.totalorder %s406, %s409
      %p415 = scmp.eq.s32.totalorder %s34, 0
      %p416 = por %p414, %p415
      %p417 = scmp.ne.s32.totalorder %s406, %s409
      %p418 = scmp.eq.s32.totalorder %s39, 1
      %p419 = por %p417, %p418
      %p420 = scmp.ne.s32.totalorder %s409, %s410
      %p421 = scmp.eq.s32.totalorder %s39, 0
      %p422 = por %p420, %p421
      %p423 = scmp.ne.s32.totalorder %s409, %s410
      %p424 = scmp.eq.s32.totalorder %s40, 1
      %p425 = por %p423, %p424
      %p427 = scmp.ne.s32.totalorder %s410, %s426
      %p428 = scmp.eq.s32.totalorder %s40, 0
      %p429 = por %p427, %p428
      %p430 = scmp.le.s32.totalorder 1, %s34
      %p431 = scmp.lt.s32.totalorder %s34, 3
      %p432 = pnand %p430, %p431
      %p433 = pneg %p432
      // Predicated region
      $region9: #{tpu_custom_call.1} parent=5 // pred_check
        _
      $region10: #{tpu_custom_call.1} parent=5 // pred_check_branch
        %435 = sbr.rel (%p432) target = $region12
      $region11: #{tpu_custom_call.1} parent=5 // pred_region
        %s436 = ssub.s32 %s34, 1
        // Predicated region
        $region13: #{tpu_custom_call.1} parent=11 // pred_check
          %p437 = pneg %p81
        $region14: #{tpu_custom_call.1} parent=11 // pred_check_branch
          %439 = sbr.rel (%p437) target = $region16
        $region15: #{tpu_custom_call.1} parent=11 // pred_region
          _
        $region16: #{tpu_custom_call.1} parent=11 // pred_fallthru
          _
        // Predicated region
        $region17: #{tpu_custom_call.1} parent=11 // pred_check
          %p440 = pneg %p102
        $region18: #{tpu_custom_call.1} parent=11 // pred_check_branch
          %442 = sbr.rel (%p440) target = $region20
        $region19: #{tpu_custom_call.1} parent=11 // pred_region
          %s444 = ssub.s32 32, 32
          %445 = vsyncadd [#allocation6], %s444
          %s446 = sshll.u32 [#allocation5], 4
          %s447 = int_to_ptr.vmem [resolvable:$true] %s446
          %452 = dma.hbm_to_vmem [thread:$0]  %s2, 32, %s447, [#allocation6], 16, 16, 1
        $region20: #{tpu_custom_call.1} parent=11 // pred_fallthru
          _
        // Predicated region
        $region21: #{tpu_custom_call.1} parent=11 // pred_check
          %p453 = pneg %p123
        $region22: #{tpu_custom_call.1} parent=11 // pred_check_branch
          %455 = sbr.rel (%p453) target = $region24
        $region23: #{tpu_custom_call.1} parent=11 // pred_region
          _
        $region24: #{tpu_custom_call.1} parent=11 // pred_fallthru
          _
        // Predicated region
        $region25: #{tpu_custom_call.1} parent=11 // pred_check
          %p456 = pneg %p144
        $region26: #{tpu_custom_call.1} parent=11 // pred_check_branch
          %458 = sbr.rel (%p456) target = $region28
        $region27: #{tpu_custom_call.1} parent=11 // pred_region
          %s460 = ssub.s32 32, 32
          %461 = vsyncadd [#allocation6], %s460
          %s462 = sshll.u32 [#allocation7], 4
          %s463 = int_to_ptr.vmem [resolvable:$true] %s462
          %468 = dma.hbm_to_vmem [thread:$0]  %s4, 32, %s463, [#allocation6], 16, 16, 1
        $region28: #{tpu_custom_call.1} parent=11 // pred_fallthru
          _
        // Predicated region
        $region29: #{tpu_custom_call.1} parent=11 // pred_check
          %p469 = pneg %p165
        $region30: #{tpu_custom_call.1} parent=11 // pred_check_branch
          %471 = sbr.rel (%p469) target = $region32
        $region31: #{tpu_custom_call.1} parent=11 // pred_region
          %s473 = ssub.s32 32, 32
          %474 = vsyncadd [#allocation9], %s473
          %s475 = sshll.u32 [#allocation8], 4
          %s476 = int_to_ptr.vmem [resolvable:$true] %s475
          %481 = dma.hbm_to_vmem [thread:$0]  %s5, 32, %s476, [#allocation9], 16, 16, 1
        $region32: #{tpu_custom_call.1} parent=11 // pred_fallthru
          _
        // Predicated region
        $region33: #{tpu_custom_call.1} parent=11 // pred_check
          %p482 = pneg %p186
        $region34: #{tpu_custom_call.1} parent=11 // pred_check_branch
          %484 = sbr.rel (%p482) target = $region36
        $region35: #{tpu_custom_call.1} parent=11 // pred_region
          %s486 = ssub.s32 32, 32
          %487 = vsyncadd [#allocation9], %s486
          %s488 = sshll.u32 [#allocation10], 4
          %s489 = int_to_ptr.vmem [resolvable:$true] %s488
          %494 = dma.hbm_to_vmem [thread:$0]  %s6, 32, %s489, [#allocation9], 16, 16, 1
        $region36: #{tpu_custom_call.1} parent=11 // pred_fallthru
          _
        // Predicated region
        $region37: #{tpu_custom_call.1} parent=11 // pred_check
          %p495 = pneg %p207
        $region38: #{tpu_custom_call.1} parent=11 // pred_check_branch
          %497 = sbr.rel (%p495) target = $region40
        $region39: #{tpu_custom_call.1} parent=11 // pred_region
          %s499 = ssub.s32 1024, 1024
          %500 = vsyncadd [#allocation12], %s499
          %s501 = sshll.u32 [#allocation11], 4
          %s502 = int_to_ptr.vmem [resolvable:$true] %s501
          %507 = dma.hbm_to_vmem [thread:$0]  %s7, 1024, %s502, [#allocation12], 128, 128, 8
        $region40: #{tpu_custom_call.1} parent=11 // pred_fallthru
          _
        // Predicated region
        $region41: #{tpu_custom_call.1} parent=11 // pred_check
          %p508 = pneg %p228
        $region42: #{tpu_custom_call.1} parent=11 // pred_check_branch
          %510 = sbr.rel (%p508) target = $region44
        $region43: #{tpu_custom_call.1} parent=11 // pred_region
          %s512 = ssub.s32 32, 32
          %513 = vsyncadd [#allocation12], %s512
          %s514 = sshll.u32 [#allocation13], 4
          %s515 = int_to_ptr.vmem [resolvable:$true] %s514
          %520 = dma.hbm_to_vmem [thread:$0]  %s8, 32, %s515, [#allocation12], 16, 16, 1
        $region44: #{tpu_custom_call.1} parent=11 // pred_fallthru
          _
        // Predicated region
        $region45: #{tpu_custom_call.1} parent=11 // pred_check
          %p521 = pneg %p249
        $region46: #{tpu_custom_call.1} parent=11 // pred_check_branch
          %523 = sbr.rel (%p521) target = $region48
        $region47: #{tpu_custom_call.1} parent=11 // pred_region
          %s525 = ssub.s32 1024, 1024
          %526 = vsyncadd [#allocation15], %s525
          %s527 = sshll.u32 [#allocation14], 4
          %s528 = int_to_ptr.vmem [resolvable:$true] %s527
          %533 = dma.hbm_to_vmem [thread:$0]  %s9, 1024, %s528, [#allocation15], 128, 128, 8
        $region48: #{tpu_custom_call.1} parent=11 // pred_fallthru
          _
        // Predicated region
        $region49: #{tpu_custom_call.1} parent=11 // pred_check
          %p534 = pneg %p270
        $region50: #{tpu_custom_call.1} parent=11 // pred_check_branch
          %536 = sbr.rel (%p534) target = $region52
        $region51: #{tpu_custom_call.1} parent=11 // pred_region
          _
        $region52: #{tpu_custom_call.1} parent=11 // pred_fallthru
          _
        // Predicated region
        $region53: #{tpu_custom_call.1} parent=11 // pred_check
          %p537 = pneg %p291
        $region54: #{tpu_custom_call.1} parent=11 // pred_check_branch
          %539 = sbr.rel (%p537) target = $region56
        $region55: #{tpu_custom_call.1} parent=11 // pred_region
          _
        $region56: #{tpu_custom_call.1} parent=11 // pred_fallthru
          _
        // Predicated region
        $region57: #{tpu_custom_call.1} parent=11 // pred_check
          %p540 = pneg %p312
        $region58: #{tpu_custom_call.1} parent=11 // pred_check_branch
          %542 = sbr.rel (%p540) target = $region60
        $region59: #{tpu_custom_call.1} parent=11 // pred_region
          %s544 = ssub.s32 32, 32
          %545 = vsyncadd [#allocation15], %s544
          %s546 = sshll.u32 [#allocation16], 4
          %s547 = int_to_ptr.vmem [resolvable:$true] %s546
          %552 = dma.hbm_to_vmem [thread:$0]  %s12, 32, %s547, [#allocation15], 16, 16, 1
        $region60: #{tpu_custom_call.1} parent=11 // pred_fallthru
          _
        // Predicated region
        $region61: #{tpu_custom_call.1} parent=11 // pred_check
          %p553 = pneg %p333
        $region62: #{tpu_custom_call.1} parent=11 // pred_check_branch
          %555 = sbr.rel (%p553) target = $region64
        $region63: #{tpu_custom_call.1} parent=11 // pred_region
          _
        $region64: #{tpu_custom_call.1} parent=11 // pred_fallthru
          _
        // Predicated region
        $region65: #{tpu_custom_call.1} parent=11 // pred_check
          %p556 = pneg %p354
        $region66: #{tpu_custom_call.1} parent=11 // pred_check_branch
          %558 = sbr.rel (%p556) target = $region68
        $region67: #{tpu_custom_call.1} parent=11 // pred_region
          _
        $region68: #{tpu_custom_call.1} parent=11 // pred_fallthru
          _
        // Predicated region
        $region69: #{tpu_custom_call.1} parent=11 // pred_check
          %p559 = pneg %p375
        $region70: #{tpu_custom_call.1} parent=11 // pred_check_branch
          %561 = sbr.rel (%p559) target = $region72
        $region71: #{tpu_custom_call.1} parent=11 // pred_region
          _
        $region72: #{tpu_custom_call.1} parent=11 // pred_fallthru
          _
        // Predicated region
        $region73: #{tpu_custom_call.1} parent=11 // pred_check
          %p562 = pneg %p396
        $region74: #{tpu_custom_call.1} parent=11 // pred_check_branch
          %564 = sbr.rel (%p562) target = $region76
        $region75: #{tpu_custom_call.1} parent=11 // pred_region
          %s566 = ssub.s32 1024, 1024
          %567 = vsyncadd [#allocation18], %s566
          %s568 = sshll.u32 [#allocation17], 4
          %s569 = int_to_ptr.vmem [resolvable:$true] %s568
          %574 = dma.hbm_to_vmem [thread:$0]  %s16, 1024, %s569, [#allocation18], 128, 128, 8
        $region76: #{tpu_custom_call.1} parent=11 // pred_fallthru
          _
      $region12: #{tpu_custom_call.1} parent=5 // pred_fallthru
        _
      %p575 = scmp.lt.s32.totalorder %s34, 2
      // Predicated region
      $region77: #{tpu_custom_call.1} parent=5 // pred_check
        %p576 = pneg %p575
      $region78: #{tpu_custom_call.1} parent=5 // pred_check_branch
        %578 = sbr.rel (%p576) target = $region80
      $region79: #{tpu_custom_call.1} parent=5 // pred_region
        // Predicated region
        $region81: #{tpu_custom_call.1} parent=79 // pred_check
          %p579 = pneg %p54
        $region82: #{tpu_custom_call.1} parent=79 // pred_check_branch
          %581 = sbr.rel (%p579) target = $region84
        $region83: #{tpu_custom_call.1} parent=79 // pred_region
          %s582 = sand.u32 %s44, 1
          %s583 = scalar_lea.sflag [#allocation3], %s582
          %s584 = sand.u32 %s44, 1
          %s585 = smul.addr %s584, 8
          %s586 = scalar_lea.vmem [#allocation2], %s585
          %s588 = ssub.s32 128, 128
          %589 = vsyncadd %s583, %s588
          %s590 = smul.addr %s34, 128
          %s591 = scalar_lea.hbm %s0, %s590
          %s593 = sshll.u32 %s586, 4
          %s594 = int_to_ptr.vmem [resolvable:$true] %s593
          %596 = dma.hbm_to_vmem [thread:$0]  %s591, 128, %s594, %s583
        $region84: #{tpu_custom_call.1} parent=79 // pred_fallthru
          _
      $region80: #{tpu_custom_call.1} parent=5 // pred_fallthru
        _
      %p597 = scmp.le.s32.totalorder 1, %s34
      %p598 = scmp.lt.s32.totalorder %s34, 3
      %p599 = pnand %p597, %p598
      %p600 = pneg %p599
      // Predicated region
      $region85: #{tpu_custom_call.1} parent=5 // pred_check
        _
      $region86: #{tpu_custom_call.1} parent=5 // pred_check_branch
        %602 = sbr.rel (%p599) target = $region88
      $region87: #{tpu_custom_call.1} parent=5 // pred_region
        %s603 = ssub.s32 %s34, 1
        %s604 = sand.u32 %s47, 1
        %s605 = scalar_lea.sflag [#allocation3], %s604
        %s606 = sand.u32 %s47, 1
        %s607 = smul.addr %s606, 8
        %s608 = scalar_lea.vmem [#allocation2], %s607
        // Predicated region
        $region89: #{tpu_custom_call.1} parent=87 // pred_check
          %p609 = pneg %p60
        $region90: #{tpu_custom_call.1} parent=87 // pred_check_branch
          %611 = sbr.rel (%p609) target = $region92
        $region91: #{tpu_custom_call.1} parent=87 // pred_region
          %612 = dma.done %s605, 128
        $region92: #{tpu_custom_call.1} parent=87 // pred_fallthru
          _
        // Predicated region
        $region93: #{tpu_custom_call.1} parent=87 // pred_check
          %p613 = pneg %p102
        $region94: #{tpu_custom_call.1} parent=87 // pred_check_branch
          %615 = sbr.rel (%p613) target = $region96
        $region95: #{tpu_custom_call.1} parent=87 // pred_region
          %616 = dma.done [#allocation6], 32
        $region96: #{tpu_custom_call.1} parent=87 // pred_fallthru
          _
        // Predicated region
        $region97: #{tpu_custom_call.1} parent=87 // pred_check
          %p617 = pneg %p144
        $region98: #{tpu_custom_call.1} parent=87 // pred_check_branch
          %619 = sbr.rel (%p617) target = $region100
        $region99: #{tpu_custom_call.1} parent=87 // pred_region
          %620 = dma.done [#allocation6], 32
        $region100: #{tpu_custom_call.1} parent=87 // pred_fallthru
          _
        // Predicated region
        $region101: #{tpu_custom_call.1} parent=87 // pred_check
          %p621 = pneg %p165
        $region102: #{tpu_custom_call.1} parent=87 // pred_check_branch
          %623 = sbr.rel (%p621) target = $region104
        $region103: #{tpu_custom_call.1} parent=87 // pred_region
          %624 = dma.done [#allocation9], 32
        $region104: #{tpu_custom_call.1} parent=87 // pred_fallthru
          _
        // Predicated region
        $region105: #{tpu_custom_call.1} parent=87 // pred_check
          %p625 = pneg %p186
        $region106: #{tpu_custom_call.1} parent=87 // pred_check_branch
          %627 = sbr.rel (%p625) target = $region108
        $region107: #{tpu_custom_call.1} parent=87 // pred_region
          %628 = dma.done [#allocation9], 32
        $region108: #{tpu_custom_call.1} parent=87 // pred_fallthru
          _
        // Predicated region
        $region109: #{tpu_custom_call.1} parent=87 // pred_check
          %p629 = pneg %p207
        $region110: #{tpu_custom_call.1} parent=87 // pred_check_branch
          %631 = sbr.rel (%p629) target = $region112
        $region111: #{tpu_custom_call.1} parent=87 // pred_region
          %632 = dma.done [#allocation12], 1024
        $region112: #{tpu_custom_call.1} parent=87 // pred_fallthru
          _
        // Predicated region
        $region113: #{tpu_custom_call.1} parent=87 // pred_check
          %p633 = pneg %p228
        $region114: #{tpu_custom_call.1} parent=87 // pred_check_branch
          %635 = sbr.rel (%p633) target = $region116
        $region115: #{tpu_custom_call.1} parent=87 // pred_region
          %636 = dma.done [#allocation12], 32
        $region116: #{tpu_custom_call.1} parent=87 // pred_fallthru
          _
        // Predicated region
        $region117: #{tpu_custom_call.1} parent=87 // pred_check
          %p637 = pneg %p249
        $region118: #{tpu_custom_call.1} parent=87 // pred_check_branch
          %639 = sbr.rel (%p637) target = $region120
        $region119: #{tpu_custom_call.1} parent=87 // pred_region
          %640 = dma.done [#allocation15], 1024
        $region120: #{tpu_custom_call.1} parent=87 // pred_fallthru
          _
        // Predicated region
        $region121: #{tpu_custom_call.1} parent=87 // pred_check
          %p641 = pneg %p312
        $region122: #{tpu_custom_call.1} parent=87 // pred_check_branch
          %643 = sbr.rel (%p641) target = $region124
        $region123: #{tpu_custom_call.1} parent=87 // pred_region
          %644 = dma.done [#allocation15], 32
        $region124: #{tpu_custom_call.1} parent=87 // pred_fallthru
          _
        // Predicated region
        $region125: #{tpu_custom_call.1} parent=87 // pred_check
          %p645 = pneg %p396
        $region126: #{tpu_custom_call.1} parent=87 // pred_check_branch
          %647 = sbr.rel (%p645) target = $region128
        $region127: #{tpu_custom_call.1} parent=87 // pred_region
          %648 = dma.done [#allocation18], 1024
        $region128: #{tpu_custom_call.1} parent=87 // pred_fallthru
          _
        %s649 = sand.u32 %s47, 1
        %s650 = scalar_lea.sflag [#allocation3], %s649
        %s651 = sand.u32 %s47, 1
        %s652 = smul.addr %s651, 8
        %s653 = scalar_lea.vmem [#allocation2], %s652
        %p654 = pneg %p60
        %p655 = pneg %p57
        %p656 = pneg %p81
        %p657 = pneg %p78
        %p658 = pneg %p102
        %p659 = pneg %p99
        %p660 = pneg %p123
        %p661 = pneg %p120
        %p662 = pneg %p144
        %p663 = pneg %p141
        %p664 = pneg %p165
        %p665 = pneg %p162
        %p666 = pneg %p186
        %p667 = pneg %p183
        %p668 = pneg %p207
        %p669 = pneg %p204
        %p670 = pneg %p228
        %p671 = pneg %p225
        %p672 = pneg %p249
        %p673 = pneg %p246
        %p674 = pneg %p270
        %p675 = pneg %p267
        %p676 = pneg %p291
        %p677 = pneg %p288
        %p678 = pneg %p312
        %p679 = pneg %p309
        %p680 = pneg %p333
        %p681 = pneg %p330
        %p682 = pneg %p354
        %p683 = pneg %p351
        %p684 = pneg %p375
        %p685 = pneg %p372
        %p686 = pneg %p396
        %p687 = pneg %p393
        %p688 = pneg %p422
        %p689 = pneg %p419
        %s690 = sand.u32 %s409, 1
        %s691 = scalar_lea.sflag [#allocation4], %s690
        %s692 = sand.u32 %s409, 1
        %s693 = smul.addr %s692, 8
        %s694 = scalar_lea.vmem [#allocation19], %s693
        %v695 = vld [vmem:[%s608] sm:$0xff]
        %v696 = vld [vmem:[%s15] sm:$0xff]
        %v697 = vld [vmem:[%s15 + $0x8] sm:$0xff]
        %v698 = vld [vmem:[%s15 + $0x10] sm:$0xff]
        %v699 = vld [vmem:[%s15 + $0x18] sm:$0xff]
        %v700 = vld [vmem:[%s15 + $0x20] sm:$0xff]
        %v701 = vld [vmem:[%s15 + $0x28] sm:$0xff]
        %v702 = vld [vmem:[%s15 + $0x30] sm:$0xff]
        %v703 = vld [vmem:[%s15 + $0x38] sm:$0xff]
        %v704 = vld [vmem:[#allocation17] sm:$0xff]
        %v705 = vld [vmem:[#allocation17 + $0x8] sm:$0xff]
        %v706 = vld [vmem:[#allocation17 + $0x10] sm:$0xff]
        %v707 = vld [vmem:[#allocation17 + $0x18] sm:$0xff]
        %v708 = vld [vmem:[#allocation17 + $0x20] sm:$0xff]
        %v709 = vld [vmem:[#allocation17 + $0x28] sm:$0xff]
        %v710 = vld [vmem:[#allocation17 + $0x30] sm:$0xff]
        %v711 = vld [vmem:[#allocation17 + $0x38] sm:$0xff]
        %v712 = vld [vmem:[%s1] sm:$0xff]
        %v713 = vld [vmem:[%s1 + $0x8] sm:$0xff]
        %v714 = vld [vmem:[%s1 + $0x10] sm:$0xff]
        %v715 = vld [vmem:[%s1 + $0x18] sm:$0xff]
        %v716 = vld [vmem:[#allocation5] sm:$0x1]
        %v718 = vlaneseq
        %v719 = vshrl.u32 %v718, 7
        %v720 = vsub.s32 0, %v719
        %v721 = vrot.slane %v716, %v720
        %vm723 = vcmask 261120
        %v725 = vsel %vm723, %v695, 0
        %727 = vmatprep.subr.mxu0 0.0
        %728 = vmatpush1.msra.mxu0 0.0
        %729 = vmatprep.subr.mxu0 0.0
        %730 = vmatpush1.msra.mxu0 0.0
        %731 = vmatprep.subr.mxu0 0.0
        %732 = vmatpush1.msra.mxu0 0.0
        %733 = vmatprep.subr.mxu0 0.0
        %734 = vmatpush1.msra.mxu0 0.0
        %735 = vmatprep.subr.mxu0 0.0
        %736 = vmatpush1.msra.mxu0 0.0
        %737 = vmatprep.subr.mxu0 0.0
        %738 = vmatpush1.msra.mxu0 0.0
        %739 = vmatprep.subr.mxu0 0.0
        %740 = vmatpush1.msra.mxu0 0.0
        %741 = vmatprep.subr.mxu0 0.0
        %742 = vmatpush1.msra.mxu0 0.0
        %743 = vmatprep.subr.mxu0 0.0
        %744 = vmatpush1.msra.mxu0 0.0
        %745 = vmatprep.subr.mxu0 0.0
        %746 = vmatpush1.msra.mxu0 0.0
        %747 = vmatprep.subr.mxu0 0.0
        %748 = vmatpush1.msra.mxu0 0.0
        %749 = vmatprep.subr.mxu0 0.0
        %750 = vmatpush1.msra.mxu0 0.0
        %751 = vmatprep.subr.mxu0 0.0
        %752 = vmatpush1.msra.mxu0 %v715
        %753 = vmatprep.subr.mxu0 0.0
        %754 = vmatpush1.msra.mxu0 %v714
        %755 = vmatprep.subr.mxu0 0.0
        %756 = vmatpush1.msra.mxu0 %v713
        %757 = vmatprep.subr.mxu0 0.0
        %758 = vmatpush1.msra.mxu0 %v712
        %759 = vmatprep.subr.mxu0 0.0
        %760 = vmatpush2.msra.mxu0 0.0
        %761 = vmatprep.subr.mxu0 0.0
        %762 = vmatpush2.msra.mxu0 0.0
        %763 = vmatprep.subr.mxu0 0.0
        %764 = vmatpush2.msra.mxu0 0.0
        %765 = vmatprep.subr.mxu0 0.0
        %766 = vmatpush2.msra.mxu0 0.0
        %767 = vmatprep.subr.mxu0 0.0
        %768 = vmatpush2.msra.mxu0 0.0
        %769 = vmatprep.subr.mxu0 0.0
        %770 = vmatpush2.msra.mxu0 0.0
        %771 = vmatprep.subr.mxu0 0.0
        %772 = vmatpush2.msra.mxu0 0.0
        %773 = vmatprep.subr.mxu0 0.0
        %774 = vmatpush2.msra.mxu0 0.0
        %775 = vmatprep.subr.mxu0 0.0
        %776 = vmatpush2.msra.mxu0 0.0
        %777 = vmatprep.subr.mxu0 0.0
        %778 = vmatpush2.msra.mxu0 0.0
        %779 = vmatprep.subr.mxu0 0.0
        %780 = vmatpush2.msra.mxu0 0.0
        %781 = vmatprep.subr.mxu0 0.0
        %782 = vmatpush2.msra.mxu0 0.0
        %783 = vmatprep.subr.mxu0 0.0
        %784 = vmatpush2.msra.mxu0 0.0
        %785 = vmatprep.subr.mxu0 0.0
        %786 = vmatpush2.msra.mxu0 0.0
        %787 = vmatprep.subr.mxu0 0.0
        %788 = vmatpush2.msra.mxu0 0.0
        %789 = vmatprep.subr.mxu0 0.0
        %790 = vmatpush2.msra.mxu0 0.0
        %791 = vmatprep.mubr.f32.mxu0 0.0
        %792 = vmatmul.mubr.f32.gmra.mxu0 %v725
        %v793 = vpop.f32.mrf.mxu0
        %v794 = vadd.f32 %v721, %v793
        %v795 = vpop.f32.mrf.mxu0
        %796 = vdwg.mxu0
        %805 = vrot.lane.b32.xlu0 %v696, 32
        %v806 = vpop.permute.xlu0 %805
        %807 = vrot.lane.b32.xlu0 %v697, 32
        %v808 = vpop.permute.xlu0 %807
        %809 = vrot.lane.b32.xlu0 %v698, 32
        %v810 = vpop.permute.xlu0 %809
        %811 = vrot.lane.b32.xlu0 %v699, 32
        %v812 = vpop.permute.xlu0 %811
        %813 = vrot.lane.b32.xlu0 %v700, 32
        %v814 = vpop.permute.xlu0 %813
        %815 = vrot.lane.b32.xlu0 %v701, 32
        %v816 = vpop.permute.xlu0 %815
        %817 = vrot.lane.b32.xlu0 %v702, 32
        %v818 = vpop.permute.xlu0 %817
        %819 = vrot.lane.b32.xlu0 %v703, 32
        %v820 = vpop.permute.xlu0 %819
        %v829 = vmul.f32 %v794, %v806
        %v830 = vmul.f32 %v794, %v808
        %v831 = vmul.f32 %v794, %v810
        %v832 = vmul.f32 %v794, %v812
        %v833 = vmul.f32 %v794, %v814
        %v834 = vmul.f32 %v794, %v816
        %v835 = vmul.f32 %v794, %v818
        %v836 = vmul.f32 %v794, %v820
        %837 = vrot.lane.b32.xlu0 %v696, 64
        %v838 = vpop.permute.xlu0 %837
        %839 = vrot.lane.b32.xlu0 %v697, 64
        %v840 = vpop.permute.xlu0 %839
        %841 = vrot.lane.b32.xlu0 %v698, 64
        %v842 = vpop.permute.xlu0 %841
        %843 = vrot.lane.b32.xlu0 %v699, 64
        %v844 = vpop.permute.xlu0 %843
        %845 = vrot.lane.b32.xlu0 %v700, 64
        %v846 = vpop.permute.xlu0 %845
        %847 = vrot.lane.b32.xlu0 %v701, 64
        %v848 = vpop.permute.xlu0 %847
        %849 = vrot.lane.b32.xlu0 %v702, 64
        %v850 = vpop.permute.xlu0 %849
        %851 = vrot.lane.b32.xlu0 %v703, 64
        %v852 = vpop.permute.xlu0 %851
        %v861 = vmul.f32 %v794, %v838
        %v862 = vmul.f32 %v794, %v840
        %v863 = vmul.f32 %v794, %v842
        %v864 = vmul.f32 %v794, %v844
        %v865 = vmul.f32 %v794, %v846
        %v866 = vmul.f32 %v794, %v848
        %v867 = vmul.f32 %v794, %v850
        %v868 = vmul.f32 %v794, %v852
        %877 = vrot.lane.b32.xlu0 %v829, 96
        %v878 = vpop.permute.xlu0 %877
        %879 = vrot.lane.b32.xlu0 %v830, 96
        %v880 = vpop.permute.xlu0 %879
        %881 = vrot.lane.b32.xlu0 %v831, 96
        %v882 = vpop.permute.xlu0 %881
        %883 = vrot.lane.b32.xlu0 %v832, 96
        %v884 = vpop.permute.xlu0 %883
        %885 = vrot.lane.b32.xlu0 %v833, 96
        %v886 = vpop.permute.xlu0 %885
        %887 = vrot.lane.b32.xlu0 %v834, 96
        %v888 = vpop.permute.xlu0 %887
        %889 = vrot.lane.b32.xlu0 %v835, 96
        %v890 = vpop.permute.xlu0 %889
        %891 = vrot.lane.b32.xlu0 %v836, 96
        %v892 = vpop.permute.xlu0 %891
        %v894 = vsel %vm723, %v794, 0
        %v896 = vsel %vm723, %v878, 0
        %v898 = vsel %vm723, %v880, 0
        %v900 = vsel %vm723, %v882, 0
        %v902 = vsel %vm723, %v884, 0
        %v904 = vsel %vm723, %v886, 0
        %v906 = vsel %vm723, %v888, 0
        %v908 = vsel %vm723, %v890, 0
        %v910 = vsel %vm723, %v892, 0
        %912 = vmatprep.subr.mxu0 0.0
        %913 = vmatpush1.xpose.msra.mxu0 0.0
        %914 = vmatprep.subr.mxu0 0.0
        %915 = vmatpush1.xpose.msra.mxu0 0.0
        %916 = vmatprep.subr.mxu0 0.0
        %917 = vmatpush1.xpose.msra.mxu0 0.0
        %918 = vmatprep.subr.mxu0 0.0
        %919 = vmatpush1.xpose.msra.mxu0 0.0
        %920 = vmatprep.subr.mxu0 0.0
        %921 = vmatpush1.xpose.msra.mxu0 0.0
        %922 = vmatprep.subr.mxu0 0.0
        %923 = vmatpush1.xpose.msra.mxu0 0.0
        %924 = vmatprep.subr.mxu0 0.0
        %925 = vmatpush1.xpose.msra.mxu0 0.0
        %926 = vmatprep.subr.mxu0 0.0
        %927 = vmatpush1.xpose.msra.mxu0 0.0
        %928 = vmatprep.subr.mxu0 0.0
        %929 = vmatpush1.xpose.msra.mxu0 %v910
        %930 = vmatprep.subr.mxu0 0.0
        %931 = vmatpush1.xpose.msra.mxu0 %v908
        %932 = vmatprep.subr.mxu0 0.0
        %933 = vmatpush1.xpose.msra.mxu0 %v906
        %934 = vmatprep.subr.mxu0 0.0
        %935 = vmatpush1.xpose.msra.mxu0 %v904
        %936 = vmatprep.subr.mxu0 0.0
        %937 = vmatpush1.xpose.msra.mxu0 %v902
        %938 = vmatprep.subr.mxu0 0.0
        %939 = vmatpush1.xpose.msra.mxu0 %v900
        %940 = vmatprep.subr.mxu0 0.0
        %941 = vmatpush1.xpose.msra.mxu0 %v898
        %942 = vmatprep.subr.mxu0 0.0
        %943 = vmatpush1.xpose.msra.mxu0 %v896
        %944 = vmatprep.subr.mxu0 0.0
        %945 = vmatpush2.xpose.msra.mxu0 0.0
        %946 = vmatprep.subr.mxu0 0.0
        %947 = vmatpush2.xpose.msra.mxu0 0.0
        %948 = vmatprep.subr.mxu0 0.0
        %949 = vmatpush2.xpose.msra.mxu0 0.0
        %950 = vmatprep.subr.mxu0 0.0
        %951 = vmatpush2.xpose.msra.mxu0 0.0
        %952 = vmatprep.subr.mxu0 0.0
        %953 = vmatpush2.xpose.msra.mxu0 0.0
        %954 = vmatprep.subr.mxu0 0.0
        %955 = vmatpush2.xpose.msra.mxu0 0.0
        %956 = vmatprep.subr.mxu0 0.0
        %957 = vmatpush2.xpose.msra.mxu0 0.0
        %958 = vmatprep.subr.mxu0 0.0
        %959 = vmatpush2.xpose.msra.mxu0 0.0
        %960 = vmatprep.subr.mxu0 0.0
        %961 = vmatpush2.xpose.msra.mxu0 0.0
        %962 = vmatprep.subr.mxu0 0.0
        %963 = vmatpush2.xpose.msra.mxu0 0.0
        %964 = vmatprep.subr.mxu0 0.0
        %965 = vmatpush2.xpose.msra.mxu0 0.0
        %966 = vmatprep.subr.mxu0 0.0
        %967 = vmatpush2.xpose.msra.mxu0 0.0
        %968 = vmatprep.subr.mxu0 0.0
        %969 = vmatpush2.xpose.msra.mxu0 0.0
        %970 = vmatprep.subr.mxu0 0.0
        %971 = vmatpush2.xpose.msra.mxu0 0.0
        %972 = vmatprep.subr.mxu0 0.0
        %973 = vmatpush2.xpose.msra.mxu0 0.0
        %974 = vmatprep.subr.mxu0 0.0
        %975 = vmatpush2.xpose.msra.mxu0 0.0
        %976 = vmatprep.mubr.f32.mxu0 0.0
        %977 = vmatmul.mubr.f32.gmra.mxu0 %v894
        %v978 = vpop.f32.mrf.mxu0
        %v979 = vadd.f32 0.0, %v978
        %v980 = vpop.f32.mrf.mxu0
        %981 = vdwg.mxu0
        %vm982 = vcmask 523264
        %v983 = vsel %vm982, %v979, -inf
        %984 = vmax.xlane.f32.xlu0 %v983
        %v985 = vpop.xlane.xlu0 %984
        %v986 = vsub.f32 %v979, %v985
        %v987 = vmul.f32 %v986, 1.442695
        %v988 = vpow.pop %v987
        %v990 = vsel %vm982, %v988, 0
        %992 = vmatprep.subr.mxu0 0.0
        %993 = vmatpush1.msra.mxu0 0.0
        %994 = vmatprep.subr.mxu0 0.0
        %995 = vmatpush1.msra.mxu0 0.0
        %996 = vmatprep.subr.mxu0 0.0
        %997 = vmatpush1.msra.mxu0 0.0
        %998 = vmatprep.subr.mxu0 0.0
        %999 = vmatpush1.msra.mxu0 0.0
        %1000 = vmatprep.subr.mxu0 0.0
        %1001 = vmatpush1.msra.mxu0 0.0
        %1002 = vmatprep.subr.mxu0 0.0
        %1003 = vmatpush1.msra.mxu0 0.0
        %1004 = vmatprep.subr.mxu0 0.0
        %1005 = vmatpush1.msra.mxu0 0.0
        %1006 = vmatprep.subr.mxu0 0.0
        %1007 = vmatpush1.msra.mxu0 0.0
        %1008 = vmatprep.subr.mxu0 0.0
        %1009 = vmatpush1.msra.mxu0 %v711
        %1010 = vmatprep.subr.mxu0 0.0
        %1011 = vmatpush1.msra.mxu0 %v710
        %1012 = vmatprep.subr.mxu0 0.0
        %1013 = vmatpush1.msra.mxu0 %v709
        %1014 = vmatprep.subr.mxu0 0.0
        %1015 = vmatpush1.msra.mxu0 %v708
        %1016 = vmatprep.subr.mxu0 0.0
        %1017 = vmatpush1.msra.mxu0 %v707
        %1018 = vmatprep.subr.mxu0 0.0
        %1019 = vmatpush1.msra.mxu0 %v706
        %1020 = vmatprep.subr.mxu0 0.0
        %1021 = vmatpush1.msra.mxu0 %v705
        %1022 = vmatprep.subr.mxu0 0.0
        %1023 = vmatpush1.msra.mxu0 %v704
        %1024 = vmatprep.subr.mxu0 0.0
        %1025 = vmatpush2.msra.mxu0 0.0
        %1026 = vmatprep.subr.mxu0 0.0
        %1027 = vmatpush2.msra.mxu0 0.0
        %1028 = vmatprep.subr.mxu0 0.0
        %1029 = vmatpush2.msra.mxu0 0.0
        %1030 = vmatprep.subr.mxu0 0.0
        %1031 = vmatpush2.msra.mxu0 0.0
        %1032 = vmatprep.subr.mxu0 0.0
        %1033 = vmatpush2.msra.mxu0 0.0
        %1034 = vmatprep.subr.mxu0 0.0
        %1035 = vmatpush2.msra.mxu0 0.0
        %1036 = vmatprep.subr.mxu0 0.0
        %1037 = vmatpush2.msra.mxu0 0.0
        %1038 = vmatprep.subr.mxu0 0.0
        %1039 = vmatpush2.msra.mxu0 0.0
        %1040 = vmatprep.subr.mxu0 0.0
        %1041 = vmatpush2.msra.mxu0 0.0
        %1042 = vmatprep.subr.mxu0 0.0
        %1043 = vmatpush2.msra.mxu0 0.0
        %1044 = vmatprep.subr.mxu0 0.0
        %1045 = vmatpush2.msra.mxu0 0.0
        %1046 = vmatprep.subr.mxu0 0.0
        %1047 = vmatpush2.msra.mxu0 0.0
        %1048 = vmatprep.subr.mxu0 0.0
        %1049 = vmatpush2.msra.mxu0 0.0
        %1050 = vmatprep.subr.mxu0 0.0
        %1051 = vmatpush2.msra.mxu0 0.0
        %1052 = vmatprep.subr.mxu0 0.0
        %1053 = vmatpush2.msra.mxu0 0.0
        %1054 = vmatprep.subr.mxu0 0.0
        %1055 = vmatpush2.msra.mxu0 0.0
        %1056 = vmatprep.mubr.f32.mxu0 0.0
        %1057 = vmatmul.mubr.f32.gmra.mxu0 %v990
        %v1058 = vpop.f32.mrf.mxu0
        %v1059 = vadd.f32 0.0, %v1058
        %v1060 = vpop.f32.mrf.mxu0
        %1061 = vdwg.mxu0
        %v1062 = vrcp.pop %v1059
        %v1063 = vmul.f32 %v988, %v1062
        %1072 = vrot.lane.b32.xlu0 %v861, 64
        %v1073 = vpop.permute.xlu0 %1072
        %1074 = vrot.lane.b32.xlu0 %v862, 64
        %v1075 = vpop.permute.xlu0 %1074
        %1076 = vrot.lane.b32.xlu0 %v863, 64
        %v1077 = vpop.permute.xlu0 %1076
        %1078 = vrot.lane.b32.xlu0 %v864, 64
        %v1079 = vpop.permute.xlu0 %1078
        %1080 = vrot.lane.b32.xlu0 %v865, 64
        %v1081 = vpop.permute.xlu0 %1080
        %1082 = vrot.lane.b32.xlu0 %v866, 64
        %v1083 = vpop.permute.xlu0 %1082
        %1084 = vrot.lane.b32.xlu0 %v867, 64
        %v1085 = vpop.permute.xlu0 %1084
        %1086 = vrot.lane.b32.xlu0 %v868, 64
        %v1087 = vpop.permute.xlu0 %1086
        %v1097 = vsel %vm982, %v1063, 0
        %1099 = vmatprep.subr.mxu0 0.0
        %1100 = vmatpush1.msra.mxu0 0.0
        %1101 = vmatprep.subr.mxu0 0.0
        %1102 = vmatpush1.msra.mxu0 0.0
        %1103 = vmatprep.subr.mxu0 0.0
        %1104 = vmatpush1.msra.mxu0 0.0
        %1105 = vmatprep.subr.mxu0 0.0
        %1106 = vmatpush1.msra.mxu0 0.0
        %1107 = vmatprep.subr.mxu0 0.0
        %1108 = vmatpush1.msra.mxu0 0.0
        %1109 = vmatprep.subr.mxu0 0.0
        %1110 = vmatpush1.msra.mxu0 0.0
        %1111 = vmatprep.subr.mxu0 0.0
        %1112 = vmatpush1.msra.mxu0 0.0
        %1113 = vmatprep.subr.mxu0 0.0
        %1114 = vmatpush1.msra.mxu0 0.0
        %1115 = vmatprep.subr.mxu0 0.0
        %1116 = vmatpush1.msra.mxu0 %v1087
        %1117 = vmatprep.subr.mxu0 0.0
        %1118 = vmatpush1.msra.mxu0 %v1085
        %1119 = vmatprep.subr.mxu0 0.0
        %1120 = vmatpush1.msra.mxu0 %v1083
        %1121 = vmatprep.subr.mxu0 0.0
        %1122 = vmatpush1.msra.mxu0 %v1081
        %1123 = vmatprep.subr.mxu0 0.0
        %1124 = vmatpush1.msra.mxu0 %v1079
        %1125 = vmatprep.subr.mxu0 0.0
        %1126 = vmatpush1.msra.mxu0 %v1077
        %1127 = vmatprep.subr.mxu0 0.0
        %1128 = vmatpush1.msra.mxu0 %v1075
        %1129 = vmatprep.subr.mxu0 0.0
        %1130 = vmatpush1.msra.mxu0 %v1073
        %1131 = vmatprep.subr.mxu0 0.0
        %1132 = vmatpush2.msra.mxu0 0.0
        %1133 = vmatprep.subr.mxu0 0.0
        %1134 = vmatpush2.msra.mxu0 0.0
        %1135 = vmatprep.subr.mxu0 0.0
        %1136 = vmatpush2.msra.mxu0 0.0
        %1137 = vmatprep.subr.mxu0 0.0
        %1138 = vmatpush2.msra.mxu0 0.0
        %1139 = vmatprep.subr.mxu0 0.0
        %1140 = vmatpush2.msra.mxu0 0.0
        %1141 = vmatprep.subr.mxu0 0.0
        %1142 = vmatpush2.msra.mxu0 0.0
        %1143 = vmatprep.subr.mxu0 0.0
        %1144 = vmatpush2.msra.mxu0 0.0
        %1145 = vmatprep.subr.mxu0 0.0
        %1146 = vmatpush2.msra.mxu0 0.0
        %1147 = vmatprep.subr.mxu0 0.0
        %1148 = vmatpush2.msra.mxu0 0.0
        %1149 = vmatprep.subr.mxu0 0.0
        %1150 = vmatpush2.msra.mxu0 0.0
        %1151 = vmatprep.subr.mxu0 0.0
        %1152 = vmatpush2.msra.mxu0 0.0
        %1153 = vmatprep.subr.mxu0 0.0
        %1154 = vmatpush2.msra.mxu0 0.0
        %1155 = vmatprep.subr.mxu0 0.0
        %1156 = vmatpush2.msra.mxu0 0.0
        %1157 = vmatprep.subr.mxu0 0.0
        %1158 = vmatpush2.msra.mxu0 0.0
        %1159 = vmatprep.subr.mxu0 0.0
        %1160 = vmatpush2.msra.mxu0 0.0
        %1161 = vmatprep.subr.mxu0 0.0
        %1162 = vmatpush2.msra.mxu0 0.0
        %1163 = vmatprep.mubr.f32.mxu0 0.0
        %1164 = vmatmul.mubr.f32.gmra.mxu0 %v1097
        %v1165 = vpop.f32.mrf.mxu0
        %v1166 = vadd.f32 0.0, %v1165
        %v1167 = vpop.f32.mrf.mxu0
        %1168 = vdwg.mxu0
        %v1169 = vld [vmem:[%s3] sm:$0xff]
        %v1170 = vld [vmem:[%s3 + $0x8] sm:$0xff]
        %v1171 = vld [vmem:[%s3 + $0x10] sm:$0xff]
        %v1172 = vld [vmem:[%s3 + $0x18] sm:$0xff]
        %v1173 = vld [vmem:[#allocation7] sm:$0x1]
        %v1175 = vlaneseq
        %v1176 = vshrl.u32 %v1175, 7
        %v1177 = vsub.s32 0, %v1176
        %v1178 = vrot.slane %v1173, %v1177
        %v1181 = vsel %vm723, %v1166, 0
        %1183 = vmatprep.subr.mxu0 0.0
        %1184 = vmatpush1.msra.mxu0 0.0
        %1185 = vmatprep.subr.mxu0 0.0
        %1186 = vmatpush1.msra.mxu0 0.0
        %1187 = vmatprep.subr.mxu0 0.0
        %1188 = vmatpush1.msra.mxu0 0.0
        %1189 = vmatprep.subr.mxu0 0.0
        %1190 = vmatpush1.msra.mxu0 0.0
        %1191 = vmatprep.subr.mxu0 0.0
        %1192 = vmatpush1.msra.mxu0 0.0
        %1193 = vmatprep.subr.mxu0 0.0
        %1194 = vmatpush1.msra.mxu0 0.0
        %1195 = vmatprep.subr.mxu0 0.0
        %1196 = vmatpush1.msra.mxu0 0.0
        %1197 = vmatprep.subr.mxu0 0.0
        %1198 = vmatpush1.msra.mxu0 0.0
        %1199 = vmatprep.subr.mxu0 0.0
        %1200 = vmatpush1.msra.mxu0 0.0
        %1201 = vmatprep.subr.mxu0 0.0
        %1202 = vmatpush1.msra.mxu0 0.0
        %1203 = vmatprep.subr.mxu0 0.0
        %1204 = vmatpush1.msra.mxu0 0.0
        %1205 = vmatprep.subr.mxu0 0.0
        %1206 = vmatpush1.msra.mxu0 0.0
        %1207 = vmatprep.subr.mxu0 0.0
        %1208 = vmatpush1.msra.mxu0 %v1172
        %1209 = vmatprep.subr.mxu0 0.0
        %1210 = vmatpush1.msra.mxu0 %v1171
        %1211 = vmatprep.subr.mxu0 0.0
        %1212 = vmatpush1.msra.mxu0 %v1170
        %1213 = vmatprep.subr.mxu0 0.0
        %1214 = vmatpush1.msra.mxu0 %v1169
        %1215 = vmatprep.subr.mxu0 0.0
        %1216 = vmatpush2.msra.mxu0 0.0
        %1217 = vmatprep.subr.mxu0 0.0
        %1218 = vmatpush2.msra.mxu0 0.0
        %1219 = vmatprep.subr.mxu0 0.0
        %1220 = vmatpush2.msra.mxu0 0.0
        %1221 = vmatprep.subr.mxu0 0.0
        %1222 = vmatpush2.msra.mxu0 0.0
        %1223 = vmatprep.subr.mxu0 0.0
        %1224 = vmatpush2.msra.mxu0 0.0
        %1225 = vmatprep.subr.mxu0 0.0
        %1226 = vmatpush2.msra.mxu0 0.0
        %1227 = vmatprep.subr.mxu0 0.0
        %1228 = vmatpush2.msra.mxu0 0.0
        %1229 = vmatprep.subr.mxu0 0.0
        %1230 = vmatpush2.msra.mxu0 0.0
        %1231 = vmatprep.subr.mxu0 0.0
        %1232 = vmatpush2.msra.mxu0 0.0
        %1233 = vmatprep.subr.mxu0 0.0
        %1234 = vmatpush2.msra.mxu0 0.0
        %1235 = vmatprep.subr.mxu0 0.0
        %1236 = vmatpush2.msra.mxu0 0.0
        %1237 = vmatprep.subr.mxu0 0.0
        %1238 = vmatpush2.msra.mxu0 0.0
        %1239 = vmatprep.subr.mxu0 0.0
        %1240 = vmatpush2.msra.mxu0 0.0
        %1241 = vmatprep.subr.mxu0 0.0
        %1242 = vmatpush2.msra.mxu0 0.0
        %1243 = vmatprep.subr.mxu0 0.0
        %1244 = vmatpush2.msra.mxu0 0.0
        %1245 = vmatprep.subr.mxu0 0.0
        %1246 = vmatpush2.msra.mxu0 0.0
        %1247 = vmatprep.mubr.f32.mxu0 0.0
        %1248 = vmatmul.mubr.f32.gmra.mxu0 %v1181
        %v1249 = vpop.f32.mrf.mxu0
        %v1250 = vadd.f32 %v1178, %v1249
        %v1251 = vpop.f32.mrf.mxu0
        %1252 = vdwg.mxu0
        %v1253 = vadd.f32 %v695, %v1250
        %v1254 = vld [vmem:[#allocation8] sm:$0x1]
        %v1255 = vld [vmem:[#allocation10] sm:$0x1]
        %v1256 = vsel %vm723, %v1253, 0.0
        %1257 = vadd.xlane.f32.xlu0 %v1256
        %v1258 = vpop.xlane.xlu0 %1257
        %v1259 = vrcp.pop 32.0
        %v1260 = vmul.f32 %v1258, %v1259
        %v1261 = vsub.f32 %v1253, %v1260
        %v1262 = vmul.f32 %v1261, %v1261
        %v1263 = vsel %vm723, %v1262, 0.0
        %1264 = vadd.xlane.f32.xlu0 %v1263
        %v1265 = vpop.xlane.xlu0 %1264
        %v1266 = vmul.f32 %v1265, %v1259
        %v1267 = vadd.f32 %v1266, 1e-05
        %v1268 = vrsqrt.pop %v1267
        %v1269 = vmul.f32 %v1261, %v1268
        %v1271 = vlaneseq
        %v1272 = vshrl.u32 %v1271, 7
        %v1273 = vsub.s32 0, %v1272
        %v1274 = vrot.slane %v1254, %v1273
        %v1276 = vmul.f32 %v1269, %v1274
        %v1278 = vlaneseq
        %v1279 = vshrl.u32 %v1278, 7
        %v1280 = vsub.s32 0, %v1279
        %v1281 = vrot.slane %v1255, %v1280
        %v1283 = vadd.f32 %v1276, %v1281
        %v1284 = vld [vmem:[#allocation11] sm:$0xff]
        %v1285 = vld [vmem:[#allocation11 + $0x8] sm:$0xff]
        %v1286 = vld [vmem:[#allocation11 + $0x10] sm:$0xff]
        %v1287 = vld [vmem:[#allocation11 + $0x18] sm:$0xff]
        %v1288 = vld [vmem:[#allocation13] sm:$0x1]
        %v1290 = vlaneseq
        %v1291 = vshrl.u32 %v1290, 7
        %v1292 = vsub.s32 0, %v1291
        %v1293 = vrot.slane %v1288, %v1292
        %v1296 = vsel %vm723, %v1283, 0
        %1298 = vmatprep.subr.mxu0 0.0
        %1299 = vmatpush1.msra.mxu0 0.0
        %1300 = vmatprep.subr.mxu0 0.0
        %1301 = vmatpush1.msra.mxu0 0.0
        %1302 = vmatprep.subr.mxu0 0.0
        %1303 = vmatpush1.msra.mxu0 0.0
        %1304 = vmatprep.subr.mxu0 0.0
        %1305 = vmatpush1.msra.mxu0 0.0
        %1306 = vmatprep.subr.mxu0 0.0
        %1307 = vmatpush1.msra.mxu0 0.0
        %1308 = vmatprep.subr.mxu0 0.0
        %1309 = vmatpush1.msra.mxu0 0.0
        %1310 = vmatprep.subr.mxu0 0.0
        %1311 = vmatpush1.msra.mxu0 0.0
        %1312 = vmatprep.subr.mxu0 0.0
        %1313 = vmatpush1.msra.mxu0 0.0
        %1314 = vmatprep.subr.mxu0 0.0
        %1315 = vmatpush1.msra.mxu0 0.0
        %1316 = vmatprep.subr.mxu0 0.0
        %1317 = vmatpush1.msra.mxu0 0.0
        %1318 = vmatprep.subr.mxu0 0.0
        %1319 = vmatpush1.msra.mxu0 0.0
        %1320 = vmatprep.subr.mxu0 0.0
        %1321 = vmatpush1.msra.mxu0 0.0
        %1322 = vmatprep.subr.mxu0 0.0
        %1323 = vmatpush1.msra.mxu0 %v1287
        %1324 = vmatprep.subr.mxu0 0.0
        %1325 = vmatpush1.msra.mxu0 %v1286
        %1326 = vmatprep.subr.mxu0 0.0
        %1327 = vmatpush1.msra.mxu0 %v1285
        %1328 = vmatprep.subr.mxu0 0.0
        %1329 = vmatpush1.msra.mxu0 %v1284
        %1330 = vmatprep.subr.mxu0 0.0
        %1331 = vmatpush2.msra.mxu0 0.0
        %1332 = vmatprep.subr.mxu0 0.0
        %1333 = vmatpush2.msra.mxu0 0.0
        %1334 = vmatprep.subr.mxu0 0.0
        %1335 = vmatpush2.msra.mxu0 0.0
        %1336 = vmatprep.subr.mxu0 0.0
        %1337 = vmatpush2.msra.mxu0 0.0
        %1338 = vmatprep.subr.mxu0 0.0
        %1339 = vmatpush2.msra.mxu0 0.0
        %1340 = vmatprep.subr.mxu0 0.0
        %1341 = vmatpush2.msra.mxu0 0.0
        %1342 = vmatprep.subr.mxu0 0.0
        %1343 = vmatpush2.msra.mxu0 0.0
        %1344 = vmatprep.subr.mxu0 0.0
        %1345 = vmatpush2.msra.mxu0 0.0
        %1346 = vmatprep.subr.mxu0 0.0
        %1347 = vmatpush2.msra.mxu0 0.0
        %1348 = vmatprep.subr.mxu0 0.0
        %1349 = vmatpush2.msra.mxu0 0.0
        %1350 = vmatprep.subr.mxu0 0.0
        %1351 = vmatpush2.msra.mxu0 0.0
        %1352 = vmatprep.subr.mxu0 0.0
        %1353 = vmatpush2.msra.mxu0 0.0
        %1354 = vmatprep.subr.mxu0 0.0
        %1355 = vmatpush2.msra.mxu0 0.0
        %1356 = vmatprep.subr.mxu0 0.0
        %1357 = vmatpush2.msra.mxu0 0.0
        %1358 = vmatprep.subr.mxu0 0.0
        %1359 = vmatpush2.msra.mxu0 0.0
        %1360 = vmatprep.subr.mxu0 0.0
        %1361 = vmatpush2.msra.mxu0 0.0
        %1362 = vmatprep.mubr.f32.mxu0 0.0
        %1363 = vmatmul.mubr.f32.gmra.mxu0 %v1296
        %v1364 = vpop.f32.mrf.mxu0
        %v1365 = vadd.f32 %v1293, %v1364
        %v1366 = vpop.f32.mrf.mxu0
        %1367 = vdwg.mxu0
        %v1368 = vmax.f32 %v1365, 0.0
        %v1369 = vld [vmem:[#allocation14] sm:$0xff]
        %v1370 = vld [vmem:[#allocation14 + $0x8] sm:$0xff]
        %v1371 = vld [vmem:[#allocation14 + $0x10] sm:$0xff]
        %v1372 = vld [vmem:[#allocation14 + $0x18] sm:$0xff]
        %v1373 = vld [vmem:[%s10] sm:$0x1]
        %v1375 = vlaneseq
        %v1376 = vshrl.u32 %v1375, 7
        %v1377 = vsub.s32 0, %v1376
        %v1378 = vrot.slane %v1373, %v1377
        %v1381 = vsel %vm723, %v1368, 0
        %1383 = vmatprep.subr.mxu0 0.0
        %1384 = vmatpush1.msra.mxu0 0.0
        %1385 = vmatprep.subr.mxu0 0.0
        %1386 = vmatpush1.msra.mxu0 0.0
        %1387 = vmatprep.subr.mxu0 0.0
        %1388 = vmatpush1.msra.mxu0 0.0
        %1389 = vmatprep.subr.mxu0 0.0
        %1390 = vmatpush1.msra.mxu0 0.0
        %1391 = vmatprep.subr.mxu0 0.0
        %1392 = vmatpush1.msra.mxu0 0.0
        %1393 = vmatprep.subr.mxu0 0.0
        %1394 = vmatpush1.msra.mxu0 0.0
        %1395 = vmatprep.subr.mxu0 0.0
        %1396 = vmatpush1.msra.mxu0 0.0
        %1397 = vmatprep.subr.mxu0 0.0
        %1398 = vmatpush1.msra.mxu0 0.0
        %1399 = vmatprep.subr.mxu0 0.0
        %1400 = vmatpush1.msra.mxu0 0.0
        %1401 = vmatprep.subr.mxu0 0.0
        %1402 = vmatpush1.msra.mxu0 0.0
        %1403 = vmatprep.subr.mxu0 0.0
        %1404 = vmatpush1.msra.mxu0 0.0
        %1405 = vmatprep.subr.mxu0 0.0
        %1406 = vmatpush1.msra.mxu0 0.0
        %1407 = vmatprep.subr.mxu0 0.0
        %1408 = vmatpush1.msra.mxu0 %v1372
        %1409 = vmatprep.subr.mxu0 0.0
        %1410 = vmatpush1.msra.mxu0 %v1371
        %1411 = vmatprep.subr.mxu0 0.0
        %1412 = vmatpush1.msra.mxu0 %v1370
        %1413 = vmatprep.subr.mxu0 0.0
        %1414 = vmatpush1.msra.mxu0 %v1369
        %1415 = vmatprep.subr.mxu0 0.0
        %1416 = vmatpush2.msra.mxu0 0.0
        %1417 = vmatprep.subr.mxu0 0.0
        %1418 = vmatpush2.msra.mxu0 0.0
        %1419 = vmatprep.subr.mxu0 0.0
        %1420 = vmatpush2.msra.mxu0 0.0
        %1421 = vmatprep.subr.mxu0 0.0
        %1422 = vmatpush2.msra.mxu0 0.0
        %1423 = vmatprep.subr.mxu0 0.0
        %1424 = vmatpush2.msra.mxu0 0.0
        %1425 = vmatprep.subr.mxu0 0.0
        %1426 = vmatpush2.msra.mxu0 0.0
        %1427 = vmatprep.subr.mxu0 0.0
        %1428 = vmatpush2.msra.mxu0 0.0
        %1429 = vmatprep.subr.mxu0 0.0
        %1430 = vmatpush2.msra.mxu0 0.0
        %1431 = vmatprep.subr.mxu0 0.0
        %1432 = vmatpush2.msra.mxu0 0.0
        %1433 = vmatprep.subr.mxu0 0.0
        %1434 = vmatpush2.msra.mxu0 0.0
        %1435 = vmatprep.subr.mxu0 0.0
        %1436 = vmatpush2.msra.mxu0 0.0
        %1437 = vmatprep.subr.mxu0 0.0
        %1438 = vmatpush2.msra.mxu0 0.0
        %1439 = vmatprep.subr.mxu0 0.0
        %1440 = vmatpush2.msra.mxu0 0.0
        %1441 = vmatprep.subr.mxu0 0.0
        %1442 = vmatpush2.msra.mxu0 0.0
        %1443 = vmatprep.subr.mxu0 0.0
        %1444 = vmatpush2.msra.mxu0 0.0
        %1445 = vmatprep.subr.mxu0 0.0
        %1446 = vmatpush2.msra.mxu0 0.0
        %1447 = vmatprep.mubr.f32.mxu0 0.0
        %1448 = vmatmul.mubr.f32.gmra.mxu0 %v1381
        %v1449 = vpop.f32.mrf.mxu0
        %v1450 = vadd.f32 %v1378, %v1449
        %v1451 = vpop.f32.mrf.mxu0
        %1452 = vdwg.mxu0
        %v1453 = vadd.f32 %v1283, %v1450
        %v1454 = vld [vmem:[%s11] sm:$0x1]
        %v1455 = vld [vmem:[#allocation16] sm:$0x1]
        %v1456 = vsel %vm723, %v1453, 0.0
        %1457 = vadd.xlane.f32.xlu0 %v1456
        %v1458 = vpop.xlane.xlu0 %1457
        %v1459 = vmul.f32 %v1458, %v1259
        %v1460 = vsub.f32 %v1453, %v1459
        %v1461 = vmul.f32 %v1460, %v1460
        %v1462 = vsel %vm723, %v1461, 0.0
        %1463 = vadd.xlane.f32.xlu0 %v1462
        %v1464 = vpop.xlane.xlu0 %1463
        %v1465 = vmul.f32 %v1464, %v1259
        %v1466 = vadd.f32 %v1465, 1e-05
        %v1467 = vrsqrt.pop %v1466
        %v1468 = vmul.f32 %v1460, %v1467
        %v1470 = vlaneseq
        %v1471 = vshrl.u32 %v1470, 7
        %v1472 = vsub.s32 0, %v1471
        %v1473 = vrot.slane %v1454, %v1472
        %v1475 = vmul.f32 %v1468, %v1473
        %v1477 = vlaneseq
        %v1478 = vshrl.u32 %v1477, 7
        %v1479 = vsub.s32 0, %v1478
        %v1480 = vrot.slane %v1455, %v1479
        %v1482 = vadd.f32 %v1475, %v1480
        %s1483 = scalar_lea.vmem %s1, 32
        %v1484 = vld [vmem:[%s1483] sm:$0xff]
        %v1485 = vld [vmem:[%s1483 + $0x8] sm:$0xff]
        %v1486 = vld [vmem:[%s1483 + $0x10] sm:$0xff]
        %v1487 = vld [vmem:[%s1483 + $0x18] sm:$0xff]
        %s1488 = scalar_lea.vmem [#allocation5], 1
        %v1489 = vld [vmem:[%s1488] sm:$0x1]
        %v1491 = vlaneseq
        %v1492 = vshrl.u32 %v1491, 7
        %v1493 = vsub.s32 0, %v1492
        %v1494 = vrot.slane %v1489, %v1493
        %v1497 = vsel %vm723, %v1482, 0
        %1499 = vmatprep.subr.mxu0 0.0
        %1500 = vmatpush1.msra.mxu0 0.0
        %1501 = vmatprep.subr.mxu0 0.0
        %1502 = vmatpush1.msra.mxu0 0.0
        %1503 = vmatprep.subr.mxu0 0.0
        %1504 = vmatpush1.msra.mxu0 0.0
        %1505 = vmatprep.subr.mxu0 0.0
        %1506 = vmatpush1.msra.mxu0 0.0
        %1507 = vmatprep.subr.mxu0 0.0
        %1508 = vmatpush1.msra.mxu0 0.0
        %1509 = vmatprep.subr.mxu0 0.0
        %1510 = vmatpush1.msra.mxu0 0.0
        %1511 = vmatprep.subr.mxu0 0.0
        %1512 = vmatpush1.msra.mxu0 0.0
        %1513 = vmatprep.subr.mxu0 0.0
        %1514 = vmatpush1.msra.mxu0 0.0
        %1515 = vmatprep.subr.mxu0 0.0
        %1516 = vmatpush1.msra.mxu0 0.0
        %1517 = vmatprep.subr.mxu0 0.0
        %1518 = vmatpush1.msra.mxu0 0.0
        %1519 = vmatprep.subr.mxu0 0.0
        %1520 = vmatpush1.msra.mxu0 0.0
        %1521 = vmatprep.subr.mxu0 0.0
        %1522 = vmatpush1.msra.mxu0 0.0
        %1523 = vmatprep.subr.mxu0 0.0
        %1524 = vmatpush1.msra.mxu0 %v1487
        %1525 = vmatprep.subr.mxu0 0.0
        %1526 = vmatpush1.msra.mxu0 %v1486
        %1527 = vmatprep.subr.mxu0 0.0
        %1528 = vmatpush1.msra.mxu0 %v1485
        %1529 = vmatprep.subr.mxu0 0.0
        %1530 = vmatpush1.msra.mxu0 %v1484
        %1531 = vmatprep.subr.mxu0 0.0
        %1532 = vmatpush2.msra.mxu0 0.0
        %1533 = vmatprep.subr.mxu0 0.0
        %1534 = vmatpush2.msra.mxu0 0.0
        %1535 = vmatprep.subr.mxu0 0.0
        %1536 = vmatpush2.msra.mxu0 0.0
        %1537 = vmatprep.subr.mxu0 0.0
        %1538 = vmatpush2.msra.mxu0 0.0
        %1539 = vmatprep.subr.mxu0 0.0
        %1540 = vmatpush2.msra.mxu0 0.0
        %1541 = vmatprep.subr.mxu0 0.0
        %1542 = vmatpush2.msra.mxu0 0.0
        %1543 = vmatprep.subr.mxu0 0.0
        %1544 = vmatpush2.msra.mxu0 0.0
        %1545 = vmatprep.subr.mxu0 0.0
        %1546 = vmatpush2.msra.mxu0 0.0
        %1547 = vmatprep.subr.mxu0 0.0
        %1548 = vmatpush2.msra.mxu0 0.0
        %1549 = vmatprep.subr.mxu0 0.0
        %1550 = vmatpush2.msra.mxu0 0.0
        %1551 = vmatprep.subr.mxu0 0.0
        %1552 = vmatpush2.msra.mxu0 0.0
        %1553 = vmatprep.subr.mxu0 0.0
        %1554 = vmatpush2.msra.mxu0 0.0
        %1555 = vmatprep.subr.mxu0 0.0
        %1556 = vmatpush2.msra.mxu0 0.0
        %1557 = vmatprep.subr.mxu0 0.0
        %1558 = vmatpush2.msra.mxu0 0.0
        %1559 = vmatprep.subr.mxu0 0.0
        %1560 = vmatpush2.msra.mxu0 0.0
        %1561 = vmatprep.subr.mxu0 0.0
        %1562 = vmatpush2.msra.mxu0 0.0
        %1563 = vmatprep.mubr.f32.mxu0 0.0
        %1564 = vmatmul.mubr.f32.gmra.mxu0 %v1497
        %v1565 = vpop.f32.mrf.mxu0
        %v1566 = vadd.f32 %v1494, %v1565
        %v1567 = vpop.f32.mrf.mxu0
        %1568 = vdwg.mxu0
        %v1569 = vmul.f32 %v1566, %v806
        %v1570 = vmul.f32 %v1566, %v808
        %v1571 = vmul.f32 %v1566, %v810
        %v1572 = vmul.f32 %v1566, %v812
        %v1573 = vmul.f32 %v1566, %v814
        %v1574 = vmul.f32 %v1566, %v816
        %v1575 = vmul.f32 %v1566, %v818
        %v1576 = vmul.f32 %v1566, %v820
        %v1577 = vmul.f32 %v1566, %v838
        %v1578 = vmul.f32 %v1566, %v840
        %v1579 = vmul.f32 %v1566, %v842
        %v1580 = vmul.f32 %v1566, %v844
        %v1581 = vmul.f32 %v1566, %v846
        %v1582 = vmul.f32 %v1566, %v848
        %v1583 = vmul.f32 %v1566, %v850
        %v1584 = vmul.f32 %v1566, %v852
        %1593 = vrot.lane.b32.xlu0 %v1569, 96
        %v1594 = vpop.permute.xlu0 %1593
        %1595 = vrot.lane.b32.xlu0 %v1570, 96
        %v1596 = vpop.permute.xlu0 %1595
        %1597 = vrot.lane.b32.xlu0 %v1571, 96
        %v1598 = vpop.permute.xlu0 %1597
        %1599 = vrot.lane.b32.xlu0 %v1572, 96
        %v1600 = vpop.permute.xlu0 %1599
        %1601 = vrot.lane.b32.xlu0 %v1573, 96
        %v1602 = vpop.permute.xlu0 %1601
        %1603 = vrot.lane.b32.xlu0 %v1574, 96
        %v1604 = vpop.permute.xlu0 %1603
        %1605 = vrot.lane.b32.xlu0 %v1575, 96
        %v1606 = vpop.permute.xlu0 %1605
        %1607 = vrot.lane.b32.xlu0 %v1576, 96
        %v1608 = vpop.permute.xlu0 %1607
        %v1610 = vsel %vm723, %v1566, 0
        %v1612 = vsel %vm723, %v1594, 0
        %v1614 = vsel %vm723, %v1596, 0
        %v1616 = vsel %vm723, %v1598, 0
        %v1618 = vsel %vm723, %v1600, 0
        %v1620 = vsel %vm723, %v1602, 0
        %v1622 = vsel %vm723, %v1604, 0
        %v1624 = vsel %vm723, %v1606, 0
        %v1626 = vsel %vm723, %v1608, 0
        %1628 = vmatprep.subr.mxu0 0.0
        %1629 = vmatpush1.xpose.msra.mxu0 0.0
        %1630 = vmatprep.subr.mxu0 0.0
        %1631 = vmatpush1.xpose.msra.mxu0 0.0
        %1632 = vmatprep.subr.mxu0 0.0
        %1633 = vmatpush1.xpose.msra.mxu0 0.0
        %1634 = vmatprep.subr.mxu0 0.0
        %1635 = vmatpush1.xpose.msra.mxu0 0.0
        %1636 = vmatprep.subr.mxu0 0.0
        %1637 = vmatpush1.xpose.msra.mxu0 0.0
        %1638 = vmatprep.subr.mxu0 0.0
        %1639 = vmatpush1.xpose.msra.mxu0 0.0
        %1640 = vmatprep.subr.mxu0 0.0
        %1641 = vmatpush1.xpose.msra.mxu0 0.0
        %1642 = vmatprep.subr.mxu0 0.0
        %1643 = vmatpush1.xpose.msra.mxu0 0.0
        %1644 = vmatprep.subr.mxu0 0.0
        %1645 = vmatpush1.xpose.msra.mxu0 %v1626
        %1646 = vmatprep.subr.mxu0 0.0
        %1647 = vmatpush1.xpose.msra.mxu0 %v1624
        %1648 = vmatprep.subr.mxu0 0.0
        %1649 = vmatpush1.xpose.msra.mxu0 %v1622
        %1650 = vmatprep.subr.mxu0 0.0
        %1651 = vmatpush1.xpose.msra.mxu0 %v1620
        %1652 = vmatprep.subr.mxu0 0.0
        %1653 = vmatpush1.xpose.msra.mxu0 %v1618
        %1654 = vmatprep.subr.mxu0 0.0
        %1655 = vmatpush1.xpose.msra.mxu0 %v1616
        %1656 = vmatprep.subr.mxu0 0.0
        %1657 = vmatpush1.xpose.msra.mxu0 %v1614
        %1658 = vmatprep.subr.mxu0 0.0
        %1659 = vmatpush1.xpose.msra.mxu0 %v1612
        %1660 = vmatprep.subr.mxu0 0.0
        %1661 = vmatpush2.xpose.msra.mxu0 0.0
        %1662 = vmatprep.subr.mxu0 0.0
        %1663 = vmatpush2.xpose.msra.mxu0 0.0
        %1664 = vmatprep.subr.mxu0 0.0
        %1665 = vmatpush2.xpose.msra.mxu0 0.0
        %1666 = vmatprep.subr.mxu0 0.0
        %1667 = vmatpush2.xpose.msra.mxu0 0.0
        %1668 = vmatprep.subr.mxu0 0.0
        %1669 = vmatpush2.xpose.msra.mxu0 0.0
        %1670 = vmatprep.subr.mxu0 0.0
        %1671 = vmatpush2.xpose.msra.mxu0 0.0
        %1672 = vmatprep.subr.mxu0 0.0
        %1673 = vmatpush2.xpose.msra.mxu0 0.0
        %1674 = vmatprep.subr.mxu0 0.0
        %1675 = vmatpush2.xpose.msra.mxu0 0.0
        %1676 = vmatprep.subr.mxu0 0.0
        %1677 = vmatpush2.xpose.msra.mxu0 0.0
        %1678 = vmatprep.subr.mxu0 0.0
        %1679 = vmatpush2.xpose.msra.mxu0 0.0
        %1680 = vmatprep.subr.mxu0 0.0
        %1681 = vmatpush2.xpose.msra.mxu0 0.0
        %1682 = vmatprep.subr.mxu0 0.0
        %1683 = vmatpush2.xpose.msra.mxu0 0.0
        %1684 = vmatprep.subr.mxu0 0.0
        %1685 = vmatpush2.xpose.msra.mxu0 0.0
        %1686 = vmatprep.subr.mxu0 0.0
        %1687 = vmatpush2.xpose.msra.mxu0 0.0
        %1688 = vmatprep.subr.mxu0 0.0
        %1689 = vmatpush2.xpose.msra.mxu0 0.0
        %1690 = vmatprep.subr.mxu0 0.0
        %1691 = vmatpush2.xpose.msra.mxu0 0.0
        %1692 = vmatprep.mubr.f32.mxu0 0.0
        %1693 = vmatmul.mubr.f32.gmra.mxu0 %v1610
        %v1694 = vpop.f32.mrf.mxu0
        %v1695 = vadd.f32 0.0, %v1694
        %v1696 = vpop.f32.mrf.mxu0
        %1697 = vdwg.mxu0
        %v1698 = vsel %vm982, %v1695, -inf
        %1699 = vmax.xlane.f32.xlu0 %v1698
        %v1700 = vpop.xlane.xlu0 %1699
        %v1701 = vsub.f32 %v1695, %v1700
        %v1702 = vmul.f32 %v1701, 1.442695
        %v1703 = vpow.pop %v1702
        %v1705 = vsel %vm982, %v1703, 0
        %1707 = vmatprep.subr.mxu0 0.0
        %1708 = vmatpush1.msra.mxu0 0.0
        %1709 = vmatprep.subr.mxu0 0.0
        %1710 = vmatpush1.msra.mxu0 0.0
        %1711 = vmatprep.subr.mxu0 0.0
        %1712 = vmatpush1.msra.mxu0 0.0
        %1713 = vmatprep.subr.mxu0 0.0
        %1714 = vmatpush1.msra.mxu0 0.0
        %1715 = vmatprep.subr.mxu0 0.0
        %1716 = vmatpush1.msra.mxu0 0.0
        %1717 = vmatprep.subr.mxu0 0.0
        %1718 = vmatpush1.msra.mxu0 0.0
        %1719 = vmatprep.subr.mxu0 0.0
        %1720 = vmatpush1.msra.mxu0 0.0
        %1721 = vmatprep.subr.mxu0 0.0
        %1722 = vmatpush1.msra.mxu0 0.0
        %1723 = vmatprep.subr.mxu0 0.0
        %1724 = vmatpush1.msra.mxu0 %v711
        %1725 = vmatprep.subr.mxu0 0.0
        %1726 = vmatpush1.msra.mxu0 %v710
        %1727 = vmatprep.subr.mxu0 0.0
        %1728 = vmatpush1.msra.mxu0 %v709
        %1729 = vmatprep.subr.mxu0 0.0
        %1730 = vmatpush1.msra.mxu0 %v708
        %1731 = vmatprep.subr.mxu0 0.0
        %1732 = vmatpush1.msra.mxu0 %v707
        %1733 = vmatprep.subr.mxu0 0.0
        %1734 = vmatpush1.msra.mxu0 %v706
        %1735 = vmatprep.subr.mxu0 0.0
        %1736 = vmatpush1.msra.mxu0 %v705
        %1737 = vmatprep.subr.mxu0 0.0
        %1738 = vmatpush1.msra.mxu0 %v704
        %1739 = vmatprep.subr.mxu0 0.0
        %1740 = vmatpush2.msra.mxu0 0.0
        %1741 = vmatprep.subr.mxu0 0.0
        %1742 = vmatpush2.msra.mxu0 0.0
        %1743 = vmatprep.subr.mxu0 0.0
        %1744 = vmatpush2.msra.mxu0 0.0
        %1745 = vmatprep.subr.mxu0 0.0
        %1746 = vmatpush2.msra.mxu0 0.0
        %1747 = vmatprep.subr.mxu0 0.0
        %1748 = vmatpush2.msra.mxu0 0.0
        %1749 = vmatprep.subr.mxu0 0.0
        %1750 = vmatpush2.msra.mxu0 0.0
        %1751 = vmatprep.subr.mxu0 0.0
        %1752 = vmatpush2.msra.mxu0 0.0
        %1753 = vmatprep.subr.mxu0 0.0
        %1754 = vmatpush2.msra.mxu0 0.0
        %1755 = vmatprep.subr.mxu0 0.0
        %1756 = vmatpush2.msra.mxu0 0.0
        %1757 = vmatprep.subr.mxu0 0.0
        %1758 = vmatpush2.msra.mxu0 0.0
        %1759 = vmatprep.subr.mxu0 0.0
        %1760 = vmatpush2.msra.mxu0 0.0
        %1761 = vmatprep.subr.mxu0 0.0
        %1762 = vmatpush2.msra.mxu0 0.0
        %1763 = vmatprep.subr.mxu0 0.0
        %1764 = vmatpush2.msra.mxu0 0.0
        %1765 = vmatprep.subr.mxu0 0.0
        %1766 = vmatpush2.msra.mxu0 0.0
        %1767 = vmatprep.subr.mxu0 0.0
        %1768 = vmatpush2.msra.mxu0 0.0
        %1769 = vmatprep.subr.mxu0 0.0
        %1770 = vmatpush2.msra.mxu0 0.0
        %1771 = vmatprep.mubr.f32.mxu0 0.0
        %1772 = vmatmul.mubr.f32.gmra.mxu0 %v1705
        %v1773 = vpop.f32.mrf.mxu0
        %v1774 = vadd.f32 0.0, %v1773
        %v1775 = vpop.f32.mrf.mxu0
        %1776 = vdwg.mxu0
        %v1777 = vrcp.pop %v1774
        %v1778 = vmul.f32 %v1703, %v1777
        %1787 = vrot.lane.b32.xlu0 %v1577, 64
        %v1788 = vpop.permute.xlu0 %1787
        %1789 = vrot.lane.b32.xlu0 %v1578, 64
        %v1790 = vpop.permute.xlu0 %1789
        %1791 = vrot.lane.b32.xlu0 %v1579, 64
        %v1792 = vpop.permute.xlu0 %1791
        %1793 = vrot.lane.b32.xlu0 %v1580, 64
        %v1794 = vpop.permute.xlu0 %1793
        %1795 = vrot.lane.b32.xlu0 %v1581, 64
        %v1796 = vpop.permute.xlu0 %1795
        %1797 = vrot.lane.b32.xlu0 %v1582, 64
        %v1798 = vpop.permute.xlu0 %1797
        %1799 = vrot.lane.b32.xlu0 %v1583, 64
        %v1800 = vpop.permute.xlu0 %1799
        %1801 = vrot.lane.b32.xlu0 %v1584, 64
        %v1802 = vpop.permute.xlu0 %1801
        %v1812 = vsel %vm982, %v1778, 0
        %1814 = vmatprep.subr.mxu0 0.0
        %1815 = vmatpush1.msra.mxu0 0.0
        %1816 = vmatprep.subr.mxu0 0.0
        %1817 = vmatpush1.msra.mxu0 0.0
        %1818 = vmatprep.subr.mxu0 0.0
        %1819 = vmatpush1.msra.mxu0 0.0
        %1820 = vmatprep.subr.mxu0 0.0
        %1821 = vmatpush1.msra.mxu0 0.0
        %1822 = vmatprep.subr.mxu0 0.0
        %1823 = vmatpush1.msra.mxu0 0.0
        %1824 = vmatprep.subr.mxu0 0.0
        %1825 = vmatpush1.msra.mxu0 0.0
        %1826 = vmatprep.subr.mxu0 0.0
        %1827 = vmatpush1.msra.mxu0 0.0
        %1828 = vmatprep.subr.mxu0 0.0
        %1829 = vmatpush1.msra.mxu0 0.0
        %1830 = vmatprep.subr.mxu0 0.0
        %1831 = vmatpush1.msra.mxu0 %v1802
        %1832 = vmatprep.subr.mxu0 0.0
        %1833 = vmatpush1.msra.mxu0 %v1800
        %1834 = vmatprep.subr.mxu0 0.0
        %1835 = vmatpush1.msra.mxu0 %v1798
        %1836 = vmatprep.subr.mxu0 0.0
        %1837 = vmatpush1.msra.mxu0 %v1796
        %1838 = vmatprep.subr.mxu0 0.0
        %1839 = vmatpush1.msra.mxu0 %v1794
        %1840 = vmatprep.subr.mxu0 0.0
        %1841 = vmatpush1.msra.mxu0 %v1792
        %1842 = vmatprep.subr.mxu0 0.0
        %1843 = vmatpush1.msra.mxu0 %v1790
        %1844 = vmatprep.subr.mxu0 0.0
        %1845 = vmatpush1.msra.mxu0 %v1788
        %1846 = vmatprep.subr.mxu0 0.0
        %1847 = vmatpush2.msra.mxu0 0.0
        %1848 = vmatprep.subr.mxu0 0.0
        %1849 = vmatpush2.msra.mxu0 0.0
        %1850 = vmatprep.subr.mxu0 0.0
        %1851 = vmatpush2.msra.mxu0 0.0
        %1852 = vmatprep.subr.mxu0 0.0
        %1853 = vmatpush2.msra.mxu0 0.0
        %1854 = vmatprep.subr.mxu0 0.0
        %1855 = vmatpush2.msra.mxu0 0.0
        %1856 = vmatprep.subr.mxu0 0.0
        %1857 = vmatpush2.msra.mxu0 0.0
        %1858 = vmatprep.subr.mxu0 0.0
        %1859 = vmatpush2.msra.mxu0 0.0
        %1860 = vmatprep.subr.mxu0 0.0
        %1861 = vmatpush2.msra.mxu0 0.0
        %1862 = vmatprep.subr.mxu0 0.0
        %1863 = vmatpush2.msra.mxu0 0.0
        %1864 = vmatprep.subr.mxu0 0.0
        %1865 = vmatpush2.msra.mxu0 0.0
        %1866 = vmatprep.subr.mxu0 0.0
        %1867 = vmatpush2.msra.mxu0 0.0
        %1868 = vmatprep.subr.mxu0 0.0
        %1869 = vmatpush2.msra.mxu0 0.0
        %1870 = vmatprep.subr.mxu0 0.0
        %1871 = vmatpush2.msra.mxu0 0.0
        %1872 = vmatprep.subr.mxu0 0.0
        %1873 = vmatpush2.msra.mxu0 0.0
        %1874 = vmatprep.subr.mxu0 0.0
        %1875 = vmatpush2.msra.mxu0 0.0
        %1876 = vmatprep.subr.mxu0 0.0
        %1877 = vmatpush2.msra.mxu0 0.0
        %1878 = vmatprep.mubr.f32.mxu0 0.0
        %1879 = vmatmul.mubr.f32.gmra.mxu0 %v1812
        %v1880 = vpop.f32.mrf.mxu0
        %v1881 = vadd.f32 0.0, %v1880
        %v1882 = vpop.f32.mrf.mxu0
        %1883 = vdwg.mxu0
        %s1884 = scalar_lea.vmem %s3, 32
        %v1885 = vld [vmem:[%s1884] sm:$0xff]
        %v1886 = vld [vmem:[%s1884 + $0x8] sm:$0xff]
        %v1887 = vld [vmem:[%s1884 + $0x10] sm:$0xff]
        %v1888 = vld [vmem:[%s1884 + $0x18] sm:$0xff]
        %s1889 = scalar_lea.vmem [#allocation7], 1
        %v1890 = vld [vmem:[%s1889] sm:$0x1]
        %v1892 = vlaneseq
        %v1893 = vshrl.u32 %v1892, 7
        %v1894 = vsub.s32 0, %v1893
        %v1895 = vrot.slane %v1890, %v1894
        %v1898 = vsel %vm723, %v1881, 0
        %1900 = vmatprep.subr.mxu0 0.0
        %1901 = vmatpush1.msra.mxu0 0.0
        %1902 = vmatprep.subr.mxu0 0.0
        %1903 = vmatpush1.msra.mxu0 0.0
        %1904 = vmatprep.subr.mxu0 0.0
        %1905 = vmatpush1.msra.mxu0 0.0
        %1906 = vmatprep.subr.mxu0 0.0
        %1907 = vmatpush1.msra.mxu0 0.0
        %1908 = vmatprep.subr.mxu0 0.0
        %1909 = vmatpush1.msra.mxu0 0.0
        %1910 = vmatprep.subr.mxu0 0.0
        %1911 = vmatpush1.msra.mxu0 0.0
        %1912 = vmatprep.subr.mxu0 0.0
        %1913 = vmatpush1.msra.mxu0 0.0
        %1914 = vmatprep.subr.mxu0 0.0
        %1915 = vmatpush1.msra.mxu0 0.0
        %1916 = vmatprep.subr.mxu0 0.0
        %1917 = vmatpush1.msra.mxu0 0.0
        %1918 = vmatprep.subr.mxu0 0.0
        %1919 = vmatpush1.msra.mxu0 0.0
        %1920 = vmatprep.subr.mxu0 0.0
        %1921 = vmatpush1.msra.mxu0 0.0
        %1922 = vmatprep.subr.mxu0 0.0
        %1923 = vmatpush1.msra.mxu0 0.0
        %1924 = vmatprep.subr.mxu0 0.0
        %1925 = vmatpush1.msra.mxu0 %v1888
        %1926 = vmatprep.subr.mxu0 0.0
        %1927 = vmatpush1.msra.mxu0 %v1887
        %1928 = vmatprep.subr.mxu0 0.0
        %1929 = vmatpush1.msra.mxu0 %v1886
        %1930 = vmatprep.subr.mxu0 0.0
        %1931 = vmatpush1.msra.mxu0 %v1885
        %1932 = vmatprep.subr.mxu0 0.0
        %1933 = vmatpush2.msra.mxu0 0.0
        %1934 = vmatprep.subr.mxu0 0.0
        %1935 = vmatpush2.msra.mxu0 0.0
        %1936 = vmatprep.subr.mxu0 0.0
        %1937 = vmatpush2.msra.mxu0 0.0
        %1938 = vmatprep.subr.mxu0 0.0
        %1939 = vmatpush2.msra.mxu0 0.0
        %1940 = vmatprep.subr.mxu0 0.0
        %1941 = vmatpush2.msra.mxu0 0.0
        %1942 = vmatprep.subr.mxu0 0.0
        %1943 = vmatpush2.msra.mxu0 0.0
        %1944 = vmatprep.subr.mxu0 0.0
        %1945 = vmatpush2.msra.mxu0 0.0
        %1946 = vmatprep.subr.mxu0 0.0
        %1947 = vmatpush2.msra.mxu0 0.0
        %1948 = vmatprep.subr.mxu0 0.0
        %1949 = vmatpush2.msra.mxu0 0.0
        %1950 = vmatprep.subr.mxu0 0.0
        %1951 = vmatpush2.msra.mxu0 0.0
        %1952 = vmatprep.subr.mxu0 0.0
        %1953 = vmatpush2.msra.mxu0 0.0
        %1954 = vmatprep.subr.mxu0 0.0
        %1955 = vmatpush2.msra.mxu0 0.0
        %1956 = vmatprep.subr.mxu0 0.0
        %1957 = vmatpush2.msra.mxu0 0.0
        %1958 = vmatprep.subr.mxu0 0.0
        %1959 = vmatpush2.msra.mxu0 0.0
        %1960 = vmatprep.subr.mxu0 0.0
        %1961 = vmatpush2.msra.mxu0 0.0
        %1962 = vmatprep.subr.mxu0 0.0
        %1963 = vmatpush2.msra.mxu0 0.0
        %1964 = vmatprep.mubr.f32.mxu0 0.0
        %1965 = vmatmul.mubr.f32.gmra.mxu0 %v1898
        %v1966 = vpop.f32.mrf.mxu0
        %v1967 = vadd.f32 %v1895, %v1966
        %v1968 = vpop.f32.mrf.mxu0
        %1969 = vdwg.mxu0
        %v1970 = vadd.f32 %v1482, %v1967
        %s1971 = scalar_lea.vmem [#allocation8], 1
        %v1972 = vld [vmem:[%s1971] sm:$0x1]
        %s1973 = scalar_lea.vmem [#allocation10], 1
        %v1974 = vld [vmem:[%s1973] sm:$0x1]
        %v1975 = vsel %vm723, %v1970, 0.0
        %1976 = vadd.xlane.f32.xlu0 %v1975
        %v1977 = vpop.xlane.xlu0 %1976
        %v1978 = vmul.f32 %v1977, %v1259
        %v1979 = vsub.f32 %v1970, %v1978
        %v1980 = vmul.f32 %v1979, %v1979
        %v1981 = vsel %vm723, %v1980, 0.0
        %1982 = vadd.xlane.f32.xlu0 %v1981
        %v1983 = vpop.xlane.xlu0 %1982
        %v1984 = vmul.f32 %v1983, %v1259
        %v1985 = vadd.f32 %v1984, 1e-05
        %v1986 = vrsqrt.pop %v1985
        %v1987 = vmul.f32 %v1979, %v1986
        %v1989 = vlaneseq
        %v1990 = vshrl.u32 %v1989, 7
        %v1991 = vsub.s32 0, %v1990
        %v1992 = vrot.slane %v1972, %v1991
        %v1994 = vmul.f32 %v1987, %v1992
        %v1996 = vlaneseq
        %v1997 = vshrl.u32 %v1996, 7
        %v1998 = vsub.s32 0, %v1997
        %v1999 = vrot.slane %v1974, %v1998
        %v2001 = vadd.f32 %v1994, %v1999
        %s2002 = scalar_lea.vmem [#allocation11], 32
        %v2003 = vld [vmem:[%s2002] sm:$0xff]
        %v2004 = vld [vmem:[%s2002 + $0x8] sm:$0xff]
        %v2005 = vld [vmem:[%s2002 + $0x10] sm:$0xff]
        %v2006 = vld [vmem:[%s2002 + $0x18] sm:$0xff]
        %s2007 = scalar_lea.vmem [#allocation13], 1
        %v2008 = vld [vmem:[%s2007] sm:$0x1]
        %v2010 = vlaneseq
        %v2011 = vshrl.u32 %v2010, 7
        %v2012 = vsub.s32 0, %v2011
        %v2013 = vrot.slane %v2008, %v2012
        %v2016 = vsel %vm723, %v2001, 0
        %2018 = vmatprep.subr.mxu0 0.0
        %2019 = vmatpush1.msra.mxu0 0.0
        %2020 = vmatprep.subr.mxu0 0.0
        %2021 = vmatpush1.msra.mxu0 0.0
        %2022 = vmatprep.subr.mxu0 0.0
        %2023 = vmatpush1.msra.mxu0 0.0
        %2024 = vmatprep.subr.mxu0 0.0
        %2025 = vmatpush1.msra.mxu0 0.0
        %2026 = vmatprep.subr.mxu0 0.0
        %2027 = vmatpush1.msra.mxu0 0.0
        %2028 = vmatprep.subr.mxu0 0.0
        %2029 = vmatpush1.msra.mxu0 0.0
        %2030 = vmatprep.subr.mxu0 0.0
        %2031 = vmatpush1.msra.mxu0 0.0
        %2032 = vmatprep.subr.mxu0 0.0
        %2033 = vmatpush1.msra.mxu0 0.0
        %2034 = vmatprep.subr.mxu0 0.0
        %2035 = vmatpush1.msra.mxu0 0.0
        %2036 = vmatprep.subr.mxu0 0.0
        %2037 = vmatpush1.msra.mxu0 0.0
        %2038 = vmatprep.subr.mxu0 0.0
        %2039 = vmatpush1.msra.mxu0 0.0
        %2040 = vmatprep.subr.mxu0 0.0
        %2041 = vmatpush1.msra.mxu0 0.0
        %2042 = vmatprep.subr.mxu0 0.0
        %2043 = vmatpush1.msra.mxu0 %v2006
        %2044 = vmatprep.subr.mxu0 0.0
        %2045 = vmatpush1.msra.mxu0 %v2005
        %2046 = vmatprep.subr.mxu0 0.0
        %2047 = vmatpush1.msra.mxu0 %v2004
        %2048 = vmatprep.subr.mxu0 0.0
        %2049 = vmatpush1.msra.mxu0 %v2003
        %2050 = vmatprep.subr.mxu0 0.0
        %2051 = vmatpush2.msra.mxu0 0.0
        %2052 = vmatprep.subr.mxu0 0.0
        %2053 = vmatpush2.msra.mxu0 0.0
        %2054 = vmatprep.subr.mxu0 0.0
        %2055 = vmatpush2.msra.mxu0 0.0
        %2056 = vmatprep.subr.mxu0 0.0
        %2057 = vmatpush2.msra.mxu0 0.0
        %2058 = vmatprep.subr.mxu0 0.0
        %2059 = vmatpush2.msra.mxu0 0.0
        %2060 = vmatprep.subr.mxu0 0.0
        %2061 = vmatpush2.msra.mxu0 0.0
        %2062 = vmatprep.subr.mxu0 0.0
        %2063 = vmatpush2.msra.mxu0 0.0
        %2064 = vmatprep.subr.mxu0 0.0
        %2065 = vmatpush2.msra.mxu0 0.0
        %2066 = vmatprep.subr.mxu0 0.0
        %2067 = vmatpush2.msra.mxu0 0.0
        %2068 = vmatprep.subr.mxu0 0.0
        %2069 = vmatpush2.msra.mxu0 0.0
        %2070 = vmatprep.subr.mxu0 0.0
        %2071 = vmatpush2.msra.mxu0 0.0
        %2072 = vmatprep.subr.mxu0 0.0
        %2073 = vmatpush2.msra.mxu0 0.0
        %2074 = vmatprep.subr.mxu0 0.0
        %2075 = vmatpush2.msra.mxu0 0.0
        %2076 = vmatprep.subr.mxu0 0.0
        %2077 = vmatpush2.msra.mxu0 0.0
        %2078 = vmatprep.subr.mxu0 0.0
        %2079 = vmatpush2.msra.mxu0 0.0
        %2080 = vmatprep.subr.mxu0 0.0
        %2081 = vmatpush2.msra.mxu0 0.0
        %2082 = vmatprep.mubr.f32.mxu0 0.0
        %2083 = vmatmul.mubr.f32.gmra.mxu0 %v2016
        %v2084 = vpop.f32.mrf.mxu0
        %v2085 = vadd.f32 %v2013, %v2084
        %v2086 = vpop.f32.mrf.mxu0
        %2087 = vdwg.mxu0
        %v2088 = vmax.f32 %v2085, 0.0
        %s2089 = scalar_lea.vmem [#allocation14], 32
        %v2090 = vld [vmem:[%s2089] sm:$0xff]
        %v2091 = vld [vmem:[%s2089 + $0x8] sm:$0xff]
        %v2092 = vld [vmem:[%s2089 + $0x10] sm:$0xff]
        %v2093 = vld [vmem:[%s2089 + $0x18] sm:$0xff]
        %s2094 = scalar_lea.vmem %s10, 1
        %v2095 = vld [vmem:[%s2094] sm:$0x1]
        %v2097 = vlaneseq
        %v2098 = vshrl.u32 %v2097, 7
        %v2099 = vsub.s32 0, %v2098
        %v2100 = vrot.slane %v2095, %v2099
        %v2103 = vsel %vm723, %v2088, 0
        %2105 = vmatprep.subr.mxu0 0.0
        %2106 = vmatpush1.msra.mxu0 0.0
        %2107 = vmatprep.subr.mxu0 0.0
        %2108 = vmatpush1.msra.mxu0 0.0
        %2109 = vmatprep.subr.mxu0 0.0
        %2110 = vmatpush1.msra.mxu0 0.0
        %2111 = vmatprep.subr.mxu0 0.0
        %2112 = vmatpush1.msra.mxu0 0.0
        %2113 = vmatprep.subr.mxu0 0.0
        %2114 = vmatpush1.msra.mxu0 0.0
        %2115 = vmatprep.subr.mxu0 0.0
        %2116 = vmatpush1.msra.mxu0 0.0
        %2117 = vmatprep.subr.mxu0 0.0
        %2118 = vmatpush1.msra.mxu0 0.0
        %2119 = vmatprep.subr.mxu0 0.0
        %2120 = vmatpush1.msra.mxu0 0.0
        %2121 = vmatprep.subr.mxu0 0.0
        %2122 = vmatpush1.msra.mxu0 0.0
        %2123 = vmatprep.subr.mxu0 0.0
        %2124 = vmatpush1.msra.mxu0 0.0
        %2125 = vmatprep.subr.mxu0 0.0
        %2126 = vmatpush1.msra.mxu0 0.0
        %2127 = vmatprep.subr.mxu0 0.0
        %2128 = vmatpush1.msra.mxu0 0.0
        %2129 = vmatprep.subr.mxu0 0.0
        %2130 = vmatpush1.msra.mxu0 %v2093
        %2131 = vmatprep.subr.mxu0 0.0
        %2132 = vmatpush1.msra.mxu0 %v2092
        %2133 = vmatprep.subr.mxu0 0.0
        %2134 = vmatpush1.msra.mxu0 %v2091
        %2135 = vmatprep.subr.mxu0 0.0
        %2136 = vmatpush1.msra.mxu0 %v2090
        %2137 = vmatprep.subr.mxu0 0.0
        %2138 = vmatpush2.msra.mxu0 0.0
        %2139 = vmatprep.subr.mxu0 0.0
        %2140 = vmatpush2.msra.mxu0 0.0
        %2141 = vmatprep.subr.mxu0 0.0
        %2142 = vmatpush2.msra.mxu0 0.0
        %2143 = vmatprep.subr.mxu0 0.0
        %2144 = vmatpush2.msra.mxu0 0.0
        %2145 = vmatprep.subr.mxu0 0.0
        %2146 = vmatpush2.msra.mxu0 0.0
        %2147 = vmatprep.subr.mxu0 0.0
        %2148 = vmatpush2.msra.mxu0 0.0
        %2149 = vmatprep.subr.mxu0 0.0
        %2150 = vmatpush2.msra.mxu0 0.0
        %2151 = vmatprep.subr.mxu0 0.0
        %2152 = vmatpush2.msra.mxu0 0.0
        %2153 = vmatprep.subr.mxu0 0.0
        %2154 = vmatpush2.msra.mxu0 0.0
        %2155 = vmatprep.subr.mxu0 0.0
        %2156 = vmatpush2.msra.mxu0 0.0
        %2157 = vmatprep.subr.mxu0 0.0
        %2158 = vmatpush2.msra.mxu0 0.0
        %2159 = vmatprep.subr.mxu0 0.0
        %2160 = vmatpush2.msra.mxu0 0.0
        %2161 = vmatprep.subr.mxu0 0.0
        %2162 = vmatpush2.msra.mxu0 0.0
        %2163 = vmatprep.subr.mxu0 0.0
        %2164 = vmatpush2.msra.mxu0 0.0
        %2165 = vmatprep.subr.mxu0 0.0
        %2166 = vmatpush2.msra.mxu0 0.0
        %2167 = vmatprep.subr.mxu0 0.0
        %2168 = vmatpush2.msra.mxu0 0.0
        %2169 = vmatprep.mubr.f32.mxu0 0.0
        %2170 = vmatmul.mubr.f32.gmra.mxu0 %v2103
        %v2171 = vpop.f32.mrf.mxu0
        %v2172 = vadd.f32 %v2100, %v2171
        %v2173 = vpop.f32.mrf.mxu0
        %2174 = vdwg.mxu0
        %v2175 = vadd.f32 %v2001, %v2172
        %s2176 = scalar_lea.vmem %s11, 1
        %v2177 = vld [vmem:[%s2176] sm:$0x1]
        %s2178 = scalar_lea.vmem [#allocation16], 1
        %v2179 = vld [vmem:[%s2178] sm:$0x1]
        %v2180 = vsel %vm723, %v2175, 0.0
        %2181 = vadd.xlane.f32.xlu0 %v2180
        %v2182 = vpop.xlane.xlu0 %2181
        %v2183 = vmul.f32 %v2182, %v1259
        %v2184 = vsub.f32 %v2175, %v2183
        %v2185 = vmul.f32 %v2184, %v2184
        %v2186 = vsel %vm723, %v2185, 0.0
        %2187 = vadd.xlane.f32.xlu0 %v2186
        %v2188 = vpop.xlane.xlu0 %2187
        %v2189 = vmul.f32 %v2188, %v1259
        %v2190 = vadd.f32 %v2189, 1e-05
        %v2191 = vrsqrt.pop %v2190
        %v2192 = vmul.f32 %v2184, %v2191
        %v2194 = vlaneseq
        %v2195 = vshrl.u32 %v2194, 7
        %v2196 = vsub.s32 0, %v2195
        %v2197 = vrot.slane %v2177, %v2196
        %v2199 = vmul.f32 %v2192, %v2197
        %v2201 = vlaneseq
        %v2202 = vshrl.u32 %v2201, 7
        %v2203 = vsub.s32 0, %v2202
        %v2204 = vrot.slane %v2179, %v2203
        %v2206 = vadd.f32 %v2199, %v2204
        %v2207 = vld [vmem:[%s13] sm:$0xff]
        %v2208 = vld [vmem:[%s13 + $0x8] sm:$0xff]
        %v2209 = vld [vmem:[%s13 + $0x10] sm:$0xff]
        %v2210 = vld [vmem:[%s13 + $0x18] sm:$0xff]
        %v2211 = vld [vmem:[%s14] sm:$0x1]
        %v2213 = vlaneseq
        %v2214 = vshrl.u32 %v2213, 7
        %v2215 = vsub.s32 0, %v2214
        %v2216 = vrot.slane %v2211, %v2215
        %v2219 = vsel %vm723, %v2206, 0
        %2221 = vmatprep.subr.mxu0 0.0
        %2222 = vmatpush1.msra.mxu0 0.0
        %2223 = vmatprep.subr.mxu0 0.0
        %2224 = vmatpush1.msra.mxu0 0.0
        %2225 = vmatprep.subr.mxu0 0.0
        %2226 = vmatpush1.msra.mxu0 0.0
        %2227 = vmatprep.subr.mxu0 0.0
        %2228 = vmatpush1.msra.mxu0 0.0
        %2229 = vmatprep.subr.mxu0 0.0
        %2230 = vmatpush1.msra.mxu0 0.0
        %2231 = vmatprep.subr.mxu0 0.0
        %2232 = vmatpush1.msra.mxu0 0.0
        %2233 = vmatprep.subr.mxu0 0.0
        %2234 = vmatpush1.msra.mxu0 0.0
        %2235 = vmatprep.subr.mxu0 0.0
        %2236 = vmatpush1.msra.mxu0 0.0
        %2237 = vmatprep.subr.mxu0 0.0
        %2238 = vmatpush1.msra.mxu0 0.0
        %2239 = vmatprep.subr.mxu0 0.0
        %2240 = vmatpush1.msra.mxu0 0.0
        %2241 = vmatprep.subr.mxu0 0.0
        %2242 = vmatpush1.msra.mxu0 0.0
        %2243 = vmatprep.subr.mxu0 0.0
        %2244 = vmatpush1.msra.mxu0 0.0
        %2245 = vmatprep.subr.mxu0 0.0
        %2246 = vmatpush1.msra.mxu0 %v2210
        %2247 = vmatprep.subr.mxu0 0.0
        %2248 = vmatpush1.msra.mxu0 %v2209
        %2249 = vmatprep.subr.mxu0 0.0
        %2250 = vmatpush1.msra.mxu0 %v2208
        %2251 = vmatprep.subr.mxu0 0.0
        %2252 = vmatpush1.msra.mxu0 %v2207
        %2253 = vmatprep.subr.mxu0 0.0
        %2254 = vmatpush2.msra.mxu0 0.0
        %2255 = vmatprep.subr.mxu0 0.0
        %2256 = vmatpush2.msra.mxu0 0.0
        %2257 = vmatprep.subr.mxu0 0.0
        %2258 = vmatpush2.msra.mxu0 0.0
        %2259 = vmatprep.subr.mxu0 0.0
        %2260 = vmatpush2.msra.mxu0 0.0
        %2261 = vmatprep.subr.mxu0 0.0
        %2262 = vmatpush2.msra.mxu0 0.0
        %2263 = vmatprep.subr.mxu0 0.0
        %2264 = vmatpush2.msra.mxu0 0.0
        %2265 = vmatprep.subr.mxu0 0.0
        %2266 = vmatpush2.msra.mxu0 0.0
        %2267 = vmatprep.subr.mxu0 0.0
        %2268 = vmatpush2.msra.mxu0 0.0
        %2269 = vmatprep.subr.mxu0 0.0
        %2270 = vmatpush2.msra.mxu0 0.0
        %2271 = vmatprep.subr.mxu0 0.0
        %2272 = vmatpush2.msra.mxu0 0.0
        %2273 = vmatprep.subr.mxu0 0.0
        %2274 = vmatpush2.msra.mxu0 0.0
        %2275 = vmatprep.subr.mxu0 0.0
        %2276 = vmatpush2.msra.mxu0 0.0
        %2277 = vmatprep.subr.mxu0 0.0
        %2278 = vmatpush2.msra.mxu0 0.0
        %2279 = vmatprep.subr.mxu0 0.0
        %2280 = vmatpush2.msra.mxu0 0.0
        %2281 = vmatprep.subr.mxu0 0.0
        %2282 = vmatpush2.msra.mxu0 0.0
        %2283 = vmatprep.subr.mxu0 0.0
        %2284 = vmatpush2.msra.mxu0 0.0
        %2285 = vmatprep.mubr.f32.mxu0 0.0
        %2286 = vmatmul.mubr.f32.gmra.mxu0 %v2219
        %v2287 = vpop.f32.mrf.mxu0
        %v2288 = vadd.f32 %v2216, %v2287
        %v2289 = vpop.f32.mrf.mxu0
        %2290 = vdwg.mxu0
        %vm2291 = vcmask 130048
        %2292 = vst.msk [vmem:[%s694] sm:$0xff] %vm2291, %v2288
        %s2293 = sand.u32 %s409, 1
        %s2294 = scalar_lea.sflag [#allocation4], %s2293
        %s2295 = sand.u32 %s409, 1
        %s2296 = smul.addr %s2295, 8
        %s2297 = scalar_lea.vmem [#allocation19], %s2296
        // Predicated region
        $region129: #{tpu_custom_call.1} parent=87 // pred_check
          %p2298 = pneg %p419
        $region130: #{tpu_custom_call.1} parent=87 // pred_check_branch
          %2300 = sbr.rel (%p2298) target = $region132
        $region131: #{tpu_custom_call.1} parent=87 // pred_region
          %s2302 = ssub.s32 128, 128
          %2303 = vsyncadd %s2294, %s2302
          %s2304 = smul.addr %s39, 128
          %s2305 = scalar_lea.hbm %s17, %s2304
          %s2307 = sshll.u32 %s2297, 4
          %s2308 = int_to_ptr.vmem [resolvable:$true] %s2307
          %2310 = dma.vmem_to_hbm [thread:$0]  %s2308, 128, %s2305, %s2294
        $region132: #{tpu_custom_call.1} parent=87 // pred_fallthru
          _
      $region88: #{tpu_custom_call.1} parent=5 // pred_fallthru
        _
      %p2311 = scmp.le.s32.totalorder 2, %s34
      // Predicated region
      $region133: #{tpu_custom_call.1} parent=5 // pred_check
        %p2312 = pneg %p2311
      $region134: #{tpu_custom_call.1} parent=5 // pred_check_branch
        %2314 = sbr.rel (%p2312) target = $region136
      $region135: #{tpu_custom_call.1} parent=5 // pred_region
        %s2315 = ssub.s32 %s34, 2
        // Predicated region
        $region137: #{tpu_custom_call.1} parent=135 // pred_check
          %p2316 = pneg %p425
        $region138: #{tpu_custom_call.1} parent=135 // pred_check_branch
          %2318 = sbr.rel (%p2316) target = $region140
        $region139: #{tpu_custom_call.1} parent=135 // pred_region
          %s2319 = sand.u32 %s410, 1
          %s2320 = scalar_lea.sflag [#allocation4], %s2319
          %s2321 = sand.u32 %s410, 1
          %s2322 = smul.addr %s2321, 8
          %s2323 = scalar_lea.vmem [#allocation19], %s2322
          %2324 = dma.done %s2320, 128
        $region140: #{tpu_custom_call.1} parent=135 // pred_fallthru
          _
      $region136: #{tpu_custom_call.1} parent=5 // pred_fallthru
        _
    $region6: #{tpu_custom_call.1} parent=1 // loop_footer
      %s38 = sadd.s32 1, %s34
    $region7: #{tpu_custom_call.1} parent=1 // loop_footer_branch
      %33 = sbr.rel target = $region3
    $region8: #{tpu_custom_call.1} parent=1 // loop_exit
      _
    %2325 = vsyncpa [#allocation3], 1
    %s2326 = scalar_lea.sflag [#allocation3], 1
    %2327 = vsyncpa %s2326, 1
    %2328 = vsyncpa [#allocation6], 1
    %2329 = vsyncpa [#allocation9], 1
    %2330 = vsyncpa [#allocation12], 1
    %2331 = vsyncpa [#allocation15], 1
    %2332 = vsyncpa [#allocation18], 1
    %2333 = vsyncpa [#allocation4], 1
    %s2334 = scalar_lea.sflag [#allocation4], 1
    %2335 = vsyncpa %s2334, 1

</llo_original>
